<compile_context>
chip_gen: v7x
topology: tpu7x:2x2x1
jax: 0.10.0
libtpu: 0.0.40
codegen_flags: <defaults>
</compile_context>

<pallas_src>
import functools

import jax
import jax.numpy as jnp
from jax.experimental import pallas as pl
from jax.experimental.pallas import tpu as pltpu


def _round_up(x, m):
    return (x + m - 1) // m * m


def _decision_kernel(sae_ref, goal_ref, ht_ref,
                     w_film_ref, b_film_ref,
                     w1h_ref, w1x_ref, b1_ref,
                     w2_ref, b2_ref,
                     w3_ref, b3_ref,
                     out_ref, *, feature_size, action_size):
    F = feature_size
    A = action_size

    # ---- goal-dependent FiLM params, once per (b, t) row --------------------
    # Fused: [TM, L] @ [L, 4F] -> [gamma1 | beta1 | gamma2 | beta2]
    film = jnp.dot(goal_ref[...], w_film_ref[...],
                   preferred_element_type=jnp.float32) + b_film_ref[...]
    gp1 = film[:, 0 * F:1 * F] + 1.0      # residual folded into gamma
    bt1 = film[:, 1 * F:2 * F]
    gp2 = film[:, 2 * F:3 * F] + 1.0
    bt2 = film[:, 3 * F:4 * F]

    # ---- ht half of ff1 (shared across actions), ff1 bias folded in ---------
    hth = jnp.dot(ht_ref[...], w1h_ref[...],
                  preferred_element_type=jnp.float32) + b1_ref[...]

    w1x = w1x_ref[...]            # bf16 [F, F]
    w2 = w2_ref[...]              # bf16 [F, F]
    b2 = b2_ref[...]              # f32  [1, F]
    w3 = w3_ref[...]              # f32  [1, F]

    cols = []
    for a in range(A):            # static unroll over the action dimension
        x = sae_ref[:, a * F:(a + 1) * F].astype(jnp.float32)
        x = gp1 * x + bt1          # film1(x, goal) + x
        x = gp2 * x + bt2          # film2(x, goal) + x
        h = hth + jnp.dot(x.astype(jnp.bfloat16), w1x,
                          preferred_element_type=jnp.float32)
        h = jnp.maximum(h, 0.0)
        h = jnp.dot(h.astype(jnp.bfloat16), w2,
                    preferred_element_type=jnp.float32) + b2
        h = jnp.maximum(h, 0.0)
        # ff3: F -> 1 projection done on VPU (mul) + XLU (lane reduce).
        cols.append(jnp.sum(h * w3, axis=-1, keepdims=True))
    out_ref[...] = jnp.concatenate(cols, axis=-1) + b3_ref[...]


def decision_maker_forward(state_action_emb, goal, ht, params, *,
                           action_size, feature_size, tile_rows=512):
    """state_action_emb: [B,T,A*F], goal: [B,T,L], ht: [B,T,F] -> [B,T,A]."""
    B, T = state_action_emb.shape[:2]
    A, F = action_size, feature_size
    L = goal.shape[-1]
    R = B * T

    # Row-major flatten (no A-fold broadcast in HBM); matmul inputs in bf16.
    sae = state_action_emb.reshape(R, A * F).astype(jnp.bfloat16)
    goal2 = goal.reshape(R, L).astype(jnp.bfloat16)
    ht2 = ht.reshape(R, F).astype(jnp.bfloat16)

    # Fuse the four FiLM projections into one [L, 4F] weight (exact packing).
    w_film = jnp.concatenate(
        [params["wg1"], params["wb1"], params["wg2"], params["wb2"]],
        axis=1).astype(jnp.bfloat16)
    b_film = jnp.concatenate(
        [params["bg1"], params["bb1"], params["bg2"], params["bb2"]],
        axis=1).astype(jnp.float32)
    w1h = params["w1"][:F].astype(jnp.bfloat16)    # ff1 weight, ht half
    w1x = params["w1"][F:].astype(jnp.bfloat16)    # ff1 weight, x half
    b1 = params["b1"].astype(jnp.float32)
    w2 = params["w2"].astype(jnp.bfloat16)
    b2 = params["b2"].astype(jnp.float32)
    w3 = params["w3"].reshape(1, F).astype(jnp.float32)
    b3 = params["b3"].reshape(1, 1).astype(jnp.float32)

    # Row tile: multiple of 8 sublanes, capped so double-buffered tiles plus
    # resident weights stay well inside the scoped VMEM on every generation.
    tm = min(tile_rows, _round_up(R, 8))
    Rp = _round_up(R, tm)
    if Rp != R:
        pad = ((0, Rp - R), (0, 0))
        sae = jnp.pad(sae, pad)
        goal2 = jnp.pad(goal2, pad)
        ht2 = jnp.pad(ht2, pad)

    def row_spec(cols):
        return pl.BlockSpec((tm, cols), lambda i: (i, 0))

    def resident(arr):    # constant block index -> stays resident in VMEM
        return pl.BlockSpec(arr.shape, lambda i: (0, 0))

    kernel = functools.partial(_decision_kernel,
                               feature_size=F, action_size=A)
    out = pl.pallas_call(
        kernel,
        out_shape=jax.ShapeDtypeStruct((Rp, A), jnp.float32),
        grid=(Rp // tm,),
        in_specs=[row_spec(A * F), row_spec(L), row_spec(F),
                  resident(w_film), resident(b_film),
                  resident(w1h), resident(w1x), resident(b1),
                  resident(w2), resident(b2),
                  resident(w3), resident(b3)],
        out_specs=pl.BlockSpec((tm, A), lambda i: (i, 0)),
        compiler_params=pltpu.CompilerParams(
            dimension_semantics=("parallel",),
            vmem_limit_bytes=32 * 1024 * 1024),
    )(sae, goal2, ht2, w_film, b_film, w1h, w1x, b1, w2, b2, w3, b3)

    return out[:R].reshape(B, T, A)


def _init_params(key, feature_size, lang_feature_size):
    F, L = feature_size, lang_feature_size
    ks = jax.random.split(key, 7)
    scale = 0.02

    def lin(k, i, o):
        kw, kb = jax.random.split(k)
        return (scale * jax.random.normal(kw, (i, o), jnp.float32),
                scale * jax.random.normal(kb, (1, o), jnp.float32))

    wg1, bg1 = lin(ks[0], L, F)
    wb1, bb1 = lin(ks[1], L, F)
    wg2, bg2 = lin(ks[2], L, F)
    wb2, bb2 = lin(ks[3], L, F)
    w1, b1 = lin(ks[4], 2 * F, F)     # ff1: [2F, F]
    w2, b2 = lin(ks[5], F, F)         # ff2
    w3, b3 = lin(ks[6], F, 1)         # ff3
    return dict(wg1=wg1, bg1=bg1, wb1=wb1, bb1=bb1,
                wg2=wg2, bg2=bg2, wb2=wb2, bb2=bb2,
                w1=w1, b1=b1, w2=w2, b2=b2, w3=w3, b3=b3)


def _reference(state_action_emb, goal, ht, params, action_size, feature_size):
    """Pure-JAX reference mirroring the PyTorch forward (bf16 matmul inputs)."""
    B, T = state_action_emb.shape[:2]
    A, F = action_size, feature_size
    bf = jnp.bfloat16

    sae = state_action_emb.reshape(B, T, A, F).astype(bf).astype(jnp.float32)
    g = jnp.broadcast_to(goal[:, :, None, :],
                         (B, T, A, goal.shape[-1])).astype(bf)
    h_in = jnp.broadcast_to(ht[:, :, None, :], (B, T, A, F)).astype(bf)

    def dot(a, w):
        return jnp.dot(a, w.astype(bf), preferred_element_type=jnp.float32)

    gam1 = dot(g, params["wg1"]) + params["bg1"][0]
    bet1 = dot(g, params["wb1"]) + params["bb1"][0]
    x = gam1 * sae + bet1 + sae
    gam2 = dot(g, params["wg2"]) + params["bg2"][0]
    bet2 = dot(g, params["wb2"]) + params["bb2"][0]
    x = gam2 * x + bet2 + x
    y = dot(jnp.concatenate([h_in.astype(jnp.float32), x], axis=-1).astype(bf),
            params["w1"]) + params["b1"][0]
    y = jnp.maximum(y, 0.0)
    y = dot(y.astype(bf), params["w2"]) + params["b2"][0]
    y = jnp.maximum(y, 0.0)
    y = jnp.dot(y, params["w3"]) + params["b3"][0]
    return y[..., 0]


if __name__ == "__main__":
    # Small, module-consistent shapes.
    B, T = 2, 4
    ACTION_SIZE = 7
    FEATURE_SIZE = 128
    LANG_FEATURE_SIZE = 128

    key = jax.random.PRNGKey(0)
    k_sae, k_goal, k_ht, k_params = jax.random.split(key, 4)

    state_action_emb = jax.random.normal(
        k_sae, (B, T, ACTION_SIZE * FEATURE_SIZE), jnp.float32)
    goal = jax.random.normal(k_goal, (B, T, LANG_FEATURE_SIZE), jnp.float32)
    ht = jax.random.normal(k_ht, (B, T, FEATURE_SIZE), jnp.float32)

    params = _init_params(k_params, FEATURE_SIZE, LANG_FEATURE_SIZE)

    fwd = jax.jit(functools.partial(
        decision_maker_forward,
        action_size=ACTION_SIZE, feature_size=FEATURE_SIZE))
    out = jax.block_until_ready(fwd(state_action_emb, goal, ht, params))

    ref = _reference(state_action_emb, goal, ht, params,
                     ACTION_SIZE, FEATURE_SIZE)
    assert out.shape == (B, T, ACTION_SIZE), out.shape
    err = float(jnp.max(jnp.abs(out - ref)))
    assert jnp.allclose(out, ref, atol=1e-3, rtol=1e-2), f"mismatch: {err}"

    print("KERNEL_OK")
</pallas_src>

<mosaic_0001>
module attributes {stable_mosaic.version = 11 : i64} {
  func.func @_decision_kernel(%arg0: i32, %arg1: memref<8x896xbf16, #tpu.memory_space<vmem>>, %arg2: memref<8x128xbf16, #tpu.memory_space<vmem>>, %arg3: memref<8x128xbf16, #tpu.memory_space<vmem>>, %arg4: memref<128x512xbf16, #tpu.memory_space<vmem>>, %arg5: memref<1x512xf32, #tpu.memory_space<vmem>>, %arg6: memref<128x128xbf16, #tpu.memory_space<vmem>>, %arg7: memref<128x128xbf16, #tpu.memory_space<vmem>>, %arg8: memref<1x128xf32, #tpu.memory_space<vmem>>, %arg9: memref<128x128xbf16, #tpu.memory_space<vmem>>, %arg10: memref<1x128xf32, #tpu.memory_space<vmem>>, %arg11: memref<1x128xf32, #tpu.memory_space<vmem>>, %arg12: memref<1x1xf32, #tpu.memory_space<vmem>>, %arg13: memref<8x7xf32, #tpu.memory_space<vmem>>) attributes {dimension_semantics = [#tpu.dimension_semantics<parallel>], iteration_bounds = array<i64: 1>, scalar_prefetch = 0 : i64, scratch_operands = 0 : i64, tpu.core_type = #tpu.core_type<tc>, window_params = [{transform_indices = @transform_0, window_bounds = array<i64: 8, 896>}, {transform_indices = @transform_1, window_bounds = array<i64: 8, 128>}, {transform_indices = @transform_2, window_bounds = array<i64: 8, 128>}, {pipeline_mode = #tpu.pipeline_mode<synchronous>, transform_indices = @transform_3, window_bounds = array<i64: 128, 512>}, {pipeline_mode = #tpu.pipeline_mode<synchronous>, transform_indices = @transform_4, window_bounds = array<i64: 1, 512>}, {pipeline_mode = #tpu.pipeline_mode<synchronous>, transform_indices = @transform_5, window_bounds = array<i64: 128, 128>}, {pipeline_mode = #tpu.pipeline_mode<synchronous>, transform_indices = @transform_6, window_bounds = array<i64: 128, 128>}, {pipeline_mode = #tpu.pipeline_mode<synchronous>, transform_indices = @transform_7, window_bounds = array<i64: 1, 128>}, {pipeline_mode = #tpu.pipeline_mode<synchronous>, transform_indices = @transform_8, window_bounds = array<i64: 128, 128>}, {pipeline_mode = #tpu.pipeline_mode<synchronous>, transform_indices = @transform_9, window_bounds = array<i64: 1, 128>}, {pipeline_mode = #tpu.pipeline_mode<synchronous>, transform_indices = @transform_10, window_bounds = array<i64: 1, 128>}, {pipeline_mode = #tpu.pipeline_mode<synchronous>, transform_indices = @transform_11, window_bounds = array<i64: 1, 1>}, {transform_indices = @transform_12, window_bounds = array<i64: 8, 7>}]} {
    %c0 = arith.constant 0 : index
    %c0_0 = arith.constant 0 : index
    %0 = vector.load %arg2[%c0, %c0_0] : memref<8x128xbf16, #tpu.memory_space<vmem>>, vector<8x128xbf16>
    %c0_1 = arith.constant 0 : index
    %c0_2 = arith.constant 0 : index
    %1 = vector.load %arg4[%c0_1, %c0_2] : memref<128x512xbf16, #tpu.memory_space<vmem>>, vector<128x512xbf16>
    %cst = arith.constant dense<0.000000e+00> : vector<8x512xf32>
    %2 = tpu.matmul %0, %1, %cst {dimension_numbers = #tpu.dot_dimension_numbers<[1], [0], [0], [1], [0, 0, 1, 1], [], []>} : vector<8x128xbf16>, vector<128x512xbf16>, vector<8x512xf32> -> vector<8x512xf32>
    %c0_3 = arith.constant 0 : index
    %c0_4 = arith.constant 0 : index
    %3 = vector.load %arg5[%c0_3, %c0_4] : memref<1x512xf32, #tpu.memory_space<vmem>>, vector<1x512xf32>
    %4 = vector.broadcast %3 : vector<1x512xf32> to vector<8x512xf32>
    %5 = arith.addf %2, %4 : vector<8x512xf32>
    %6 = vector.extract_strided_slice %5 {offsets = [0, 0], sizes = [8, 128], strides = [1, 1]} : vector<8x512xf32> to vector<8x128xf32>
    %cst_5 = arith.constant 1.000000e+00 : f32
    %7 = vector.broadcast %cst_5 : f32 to vector<8x128xf32>
    %8 = arith.addf %6, %7 : vector<8x128xf32>
    %9 = vector.extract_strided_slice %5 {offsets = [0, 128], sizes = [8, 128], strides = [1, 1]} : vector<8x512xf32> to vector<8x128xf32>
    %10 = vector.extract_strided_slice %5 {offsets = [0, 256], sizes = [8, 128], strides = [1, 1]} : vector<8x512xf32> to vector<8x128xf32>
    %cst_6 = arith.constant 1.000000e+00 : f32
    %11 = vector.broadcast %cst_6 : f32 to vector<8x128xf32>
    %12 = arith.addf %10, %11 : vector<8x128xf32>
    %13 = vector.extract_strided_slice %5 {offsets = [0, 384], sizes = [8, 128], strides = [1, 1]} : vector<8x512xf32> to vector<8x128xf32>
    %c0_7 = arith.constant 0 : index
    %c0_8 = arith.constant 0 : index
    %14 = vector.load %arg3[%c0_7, %c0_8] : memref<8x128xbf16, #tpu.memory_space<vmem>>, vector<8x128xbf16>
    %c0_9 = arith.constant 0 : index
    %c0_10 = arith.constant 0 : index
    %15 = vector.load %arg6[%c0_9, %c0_10] : memref<128x128xbf16, #tpu.memory_space<vmem>>, vector<128x128xbf16>
    %cst_11 = arith.constant dense<0.000000e+00> : vector<8x128xf32>
    %16 = tpu.matmul %14, %15, %cst_11 {dimension_numbers = #tpu.dot_dimension_numbers<[1], [0], [0], [1], [0, 0, 1, 1], [], []>} : vector<8x128xbf16>, vector<128x128xbf16>, vector<8x128xf32> -> vector<8x128xf32>
    %c0_12 = arith.constant 0 : index
    %c0_13 = arith.constant 0 : index
    %17 = vector.load %arg8[%c0_12, %c0_13] : memref<1x128xf32, #tpu.memory_space<vmem>>, vector<1x128xf32>
    %18 = vector.broadcast %17 : vector<1x128xf32> to vector<8x128xf32>
    %19 = arith.addf %16, %18 : vector<8x128xf32>
    %c0_14 = arith.constant 0 : index
    %c0_15 = arith.constant 0 : index
    %20 = vector.load %arg7[%c0_14, %c0_15] : memref<128x128xbf16, #tpu.memory_space<vmem>>, vector<128x128xbf16>
    %c0_16 = arith.constant 0 : index
    %c0_17 = arith.constant 0 : index
    %21 = vector.load %arg9[%c0_16, %c0_17] : memref<128x128xbf16, #tpu.memory_space<vmem>>, vector<128x128xbf16>
    %c0_18 = arith.constant 0 : index
    %c0_19 = arith.constant 0 : index
    %22 = vector.load %arg10[%c0_18, %c0_19] : memref<1x128xf32, #tpu.memory_space<vmem>>, vector<1x128xf32>
    %c0_20 = arith.constant 0 : index
    %c0_21 = arith.constant 0 : index
    %23 = vector.load %arg11[%c0_20, %c0_21] : memref<1x128xf32, #tpu.memory_space<vmem>>, vector<1x128xf32>
    %c0_22 = arith.constant 0 : index
    %c0_23 = arith.constant 0 : index
    %24 = vector.load %arg1[%c0_22, %c0_23] : memref<8x896xbf16, #tpu.memory_space<vmem>>, vector<8x128xbf16>
    %25 = arith.extf %24 : vector<8x128xbf16> to vector<8x128xf32>
    %26 = arith.mulf %8, %25 : vector<8x128xf32>
    %27 = arith.addf %26, %9 : vector<8x128xf32>
    %28 = arith.mulf %12, %27 : vector<8x128xf32>
    %29 = arith.addf %28, %13 : vector<8x128xf32>
    %30 = arith.truncf %29 : vector<8x128xf32> to vector<8x128xbf16>
    %cst_24 = arith.constant dense<0.000000e+00> : vector<8x128xf32>
    %31 = tpu.matmul %30, %20, %cst_24 {dimension_numbers = #tpu.dot_dimension_numbers<[1], [0], [0], [1], [0, 0, 1, 1], [], []>} : vector<8x128xbf16>, vector<128x128xbf16>, vector<8x128xf32> -> vector<8x128xf32>
    %32 = arith.addf %19, %31 : vector<8x128xf32>
    %cst_25 = arith.constant 0.000000e+00 : f32
    %33 = vector.broadcast %cst_25 : f32 to vector<8x128xf32>
    %34 = arith.maximumf %32, %33 : vector<8x128xf32>
    %35 = arith.truncf %34 : vector<8x128xf32> to vector<8x128xbf16>
    %cst_26 = arith.constant dense<0.000000e+00> : vector<8x128xf32>
    %36 = tpu.matmul %35, %21, %cst_26 {dimension_numbers = #tpu.dot_dimension_numbers<[1], [0], [0], [1], [0, 0, 1, 1], [], []>} : vector<8x128xbf16>, vector<128x128xbf16>, vector<8x128xf32> -> vector<8x128xf32>
    %37 = vector.broadcast %22 : vector<1x128xf32> to vector<8x128xf32>
    %38 = arith.addf %36, %37 : vector<8x128xf32>
    %cst_27 = arith.constant 0.000000e+00 : f32
    %39 = vector.broadcast %cst_27 : f32 to vector<8x128xf32>
    %40 = arith.maximumf %38, %39 : vector<8x128xf32>
    %41 = vector.broadcast %23 : vector<1x128xf32> to vector<8x128xf32>
    %42 = arith.mulf %40, %41 : vector<8x128xf32>
    %cst_28 = arith.constant dense<0.000000e+00> : vector<8xf32>
    %43 = vector.multi_reduction <add>, %42, %cst_28 [1] : vector<8x128xf32> to vector<8xf32>
    %44 = vector.shape_cast %43 : vector<8xf32> to vector<8x1xf32>
    %c0_29 = arith.constant 0 : index
    %c128 = arith.constant 128 : index
    %45 = vector.load %arg1[%c0_29, %c128] : memref<8x896xbf16, #tpu.memory_space<vmem>>, vector<8x128xbf16>
    %46 = arith.extf %45 : vector<8x128xbf16> to vector<8x128xf32>
    %47 = arith.mulf %8, %46 : vector<8x128xf32>
    %48 = arith.addf %47, %9 : vector<8x128xf32>
    %49 = arith.mulf %12, %48 : vector<8x128xf32>
    %50 = arith.addf %49, %13 : vector<8x128xf32>
    %51 = arith.truncf %50 : vector<8x128xf32> to vector<8x128xbf16>
    %cst_30 = arith.constant dense<0.000000e+00> : vector<8x128xf32>
    %52 = tpu.matmul %51, %20, %cst_30 {dimension_numbers = #tpu.dot_dimension_numbers<[1], [0], [0], [1], [0, 0, 1, 1], [], []>} : vector<8x128xbf16>, vector<128x128xbf16>, vector<8x128xf32> -> vector<8x128xf32>
    %53 = arith.addf %19, %52 : vector<8x128xf32>
    %cst_31 = arith.constant 0.000000e+00 : f32
    %54 = vector.broadcast %cst_31 : f32 to vector<8x128xf32>
    %55 = arith.maximumf %53, %54 : vector<8x128xf32>
    %56 = arith.truncf %55 : vector<8x128xf32> to vector<8x128xbf16>
    %cst_32 = arith.constant dense<0.000000e+00> : vector<8x128xf32>
    %57 = tpu.matmul %56, %21, %cst_32 {dimension_numbers = #tpu.dot_dimension_numbers<[1], [0], [0], [1], [0, 0, 1, 1], [], []>} : vector<8x128xbf16>, vector<128x128xbf16>, vector<8x128xf32> -> vector<8x128xf32>
    %58 = vector.broadcast %22 : vector<1x128xf32> to vector<8x128xf32>
    %59 = arith.addf %57, %58 : vector<8x128xf32>
    %cst_33 = arith.constant 0.000000e+00 : f32
    %60 = vector.broadcast %cst_33 : f32 to vector<8x128xf32>
    %61 = arith.maximumf %59, %60 : vector<8x128xf32>
    %62 = vector.broadcast %23 : vector<1x128xf32> to vector<8x128xf32>
    %63 = arith.mulf %61, %62 : vector<8x128xf32>
    %cst_34 = arith.constant dense<0.000000e+00> : vector<8xf32>
    %64 = vector.multi_reduction <add>, %63, %cst_34 [1] : vector<8x128xf32> to vector<8xf32>
    %65 = vector.shape_cast %64 : vector<8xf32> to vector<8x1xf32>
    %c0_35 = arith.constant 0 : index
    %c256 = arith.constant 256 : index
    %66 = vector.load %arg1[%c0_35, %c256] : memref<8x896xbf16, #tpu.memory_space<vmem>>, vector<8x128xbf16>
    %67 = arith.extf %66 : vector<8x128xbf16> to vector<8x128xf32>
    %68 = arith.mulf %8, %67 : vector<8x128xf32>
    %69 = arith.addf %68, %9 : vector<8x128xf32>
    %70 = arith.mulf %12, %69 : vector<8x128xf32>
    %71 = arith.addf %70, %13 : vector<8x128xf32>
    %72 = arith.truncf %71 : vector<8x128xf32> to vector<8x128xbf16>
    %cst_36 = arith.constant dense<0.000000e+00> : vector<8x128xf32>
    %73 = tpu.matmul %72, %20, %cst_36 {dimension_numbers = #tpu.dot_dimension_numbers<[1], [0], [0], [1], [0, 0, 1, 1], [], []>} : vector<8x128xbf16>, vector<128x128xbf16>, vector<8x128xf32> -> vector<8x128xf32>
    %74 = arith.addf %19, %73 : vector<8x128xf32>
    %cst_37 = arith.constant 0.000000e+00 : f32
    %75 = vector.broadcast %cst_37 : f32 to vector<8x128xf32>
    %76 = arith.maximumf %74, %75 : vector<8x128xf32>
    %77 = arith.truncf %76 : vector<8x128xf32> to vector<8x128xbf16>
    %cst_38 = arith.constant dense<0.000000e+00> : vector<8x128xf32>
    %78 = tpu.matmul %77, %21, %cst_38 {dimension_numbers = #tpu.dot_dimension_numbers<[1], [0], [0], [1], [0, 0, 1, 1], [], []>} : vector<8x128xbf16>, vector<128x128xbf16>, vector<8x128xf32> -> vector<8x128xf32>
    %79 = vector.broadcast %22 : vector<1x128xf32> to vector<8x128xf32>
    %80 = arith.addf %78, %79 : vector<8x128xf32>
    %cst_39 = arith.constant 0.000000e+00 : f32
    %81 = vector.broadcast %cst_39 : f32 to vector<8x128xf32>
    %82 = arith.maximumf %80, %81 : vector<8x128xf32>
    %83 = vector.broadcast %23 : vector<1x128xf32> to vector<8x128xf32>
    %84 = arith.mulf %82, %83 : vector<8x128xf32>
    %cst_40 = arith.constant dense<0.000000e+00> : vector<8xf32>
    %85 = vector.multi_reduction <add>, %84, %cst_40 [1] : vector<8x128xf32> to vector<8xf32>
    %86 = vector.shape_cast %85 : vector<8xf32> to vector<8x1xf32>
    %c0_41 = arith.constant 0 : index
    %c384 = arith.constant 384 : index
    %87 = vector.load %arg1[%c0_41, %c384] : memref<8x896xbf16, #tpu.memory_space<vmem>>, vector<8x128xbf16>
    %88 = arith.extf %87 : vector<8x128xbf16> to vector<8x128xf32>
    %89 = arith.mulf %8, %88 : vector<8x128xf32>
    %90 = arith.addf %89, %9 : vector<8x128xf32>
    %91 = arith.mulf %12, %90 : vector<8x128xf32>
    %92 = arith.addf %91, %13 : vector<8x128xf32>
    %93 = arith.truncf %92 : vector<8x128xf32> to vector<8x128xbf16>
    %cst_42 = arith.constant dense<0.000000e+00> : vector<8x128xf32>
    %94 = tpu.matmul %93, %20, %cst_42 {dimension_numbers = #tpu.dot_dimension_numbers<[1], [0], [0], [1], [0, 0, 1, 1], [], []>} : vector<8x128xbf16>, vector<128x128xbf16>, vector<8x128xf32> -> vector<8x128xf32>
    %95 = arith.addf %19, %94 : vector<8x128xf32>
    %cst_43 = arith.constant 0.000000e+00 : f32
    %96 = vector.broadcast %cst_43 : f32 to vector<8x128xf32>
    %97 = arith.maximumf %95, %96 : vector<8x128xf32>
    %98 = arith.truncf %97 : vector<8x128xf32> to vector<8x128xbf16>
    %cst_44 = arith.constant dense<0.000000e+00> : vector<8x128xf32>
    %99 = tpu.matmul %98, %21, %cst_44 {dimension_numbers = #tpu.dot_dimension_numbers<[1], [0], [0], [1], [0, 0, 1, 1], [], []>} : vector<8x128xbf16>, vector<128x128xbf16>, vector<8x128xf32> -> vector<8x128xf32>
    %100 = vector.broadcast %22 : vector<1x128xf32> to vector<8x128xf32>
    %101 = arith.addf %99, %100 : vector<8x128xf32>
    %cst_45 = arith.constant 0.000000e+00 : f32
    %102 = vector.broadcast %cst_45 : f32 to vector<8x128xf32>
    %103 = arith.maximumf %101, %102 : vector<8x128xf32>
    %104 = vector.broadcast %23 : vector<1x128xf32> to vector<8x128xf32>
    %105 = arith.mulf %103, %104 : vector<8x128xf32>
    %cst_46 = arith.constant dense<0.000000e+00> : vector<8xf32>
    %106 = vector.multi_reduction <add>, %105, %cst_46 [1] : vector<8x128xf32> to vector<8xf32>
    %107 = vector.shape_cast %106 : vector<8xf32> to vector<8x1xf32>
    %c0_47 = arith.constant 0 : index
    %c512 = arith.constant 512 : index
    %108 = vector.load %arg1[%c0_47, %c512] : memref<8x896xbf16, #tpu.memory_space<vmem>>, vector<8x128xbf16>
    %109 = arith.extf %108 : vector<8x128xbf16> to vector<8x128xf32>
    %110 = arith.mulf %8, %109 : vector<8x128xf32>
    %111 = arith.addf %110, %9 : vector<8x128xf32>
    %112 = arith.mulf %12, %111 : vector<8x128xf32>
    %113 = arith.addf %112, %13 : vector<8x128xf32>
    %114 = arith.truncf %113 : vector<8x128xf32> to vector<8x128xbf16>
    %cst_48 = arith.constant dense<0.000000e+00> : vector<8x128xf32>
    %115 = tpu.matmul %114, %20, %cst_48 {dimension_numbers = #tpu.dot_dimension_numbers<[1], [0], [0], [1], [0, 0, 1, 1], [], []>} : vector<8x128xbf16>, vector<128x128xbf16>, vector<8x128xf32> -> vector<8x128xf32>
    %116 = arith.addf %19, %115 : vector<8x128xf32>
    %cst_49 = arith.constant 0.000000e+00 : f32
    %117 = vector.broadcast %cst_49 : f32 to vector<8x128xf32>
    %118 = arith.maximumf %116, %117 : vector<8x128xf32>
    %119 = arith.truncf %118 : vector<8x128xf32> to vector<8x128xbf16>
    %cst_50 = arith.constant dense<0.000000e+00> : vector<8x128xf32>
    %120 = tpu.matmul %119, %21, %cst_50 {dimension_numbers = #tpu.dot_dimension_numbers<[1], [0], [0], [1], [0, 0, 1, 1], [], []>} : vector<8x128xbf16>, vector<128x128xbf16>, vector<8x128xf32> -> vector<8x128xf32>
    %121 = vector.broadcast %22 : vector<1x128xf32> to vector<8x128xf32>
    %122 = arith.addf %120, %121 : vector<8x128xf32>
    %cst_51 = arith.constant 0.000000e+00 : f32
    %123 = vector.broadcast %cst_51 : f32 to vector<8x128xf32>
    %124 = arith.maximumf %122, %123 : vector<8x128xf32>
    %125 = vector.broadcast %23 : vector<1x128xf32> to vector<8x128xf32>
    %126 = arith.mulf %124, %125 : vector<8x128xf32>
    %cst_52 = arith.constant dense<0.000000e+00> : vector<8xf32>
    %127 = vector.multi_reduction <add>, %126, %cst_52 [1] : vector<8x128xf32> to vector<8xf32>
    %128 = vector.shape_cast %127 : vector<8xf32> to vector<8x1xf32>
    %c0_53 = arith.constant 0 : index
    %c640 = arith.constant 640 : index
    %129 = vector.load %arg1[%c0_53, %c640] : memref<8x896xbf16, #tpu.memory_space<vmem>>, vector<8x128xbf16>
    %130 = arith.extf %129 : vector<8x128xbf16> to vector<8x128xf32>
    %131 = arith.mulf %8, %130 : vector<8x128xf32>
    %132 = arith.addf %131, %9 : vector<8x128xf32>
    %133 = arith.mulf %12, %132 : vector<8x128xf32>
    %134 = arith.addf %133, %13 : vector<8x128xf32>
    %135 = arith.truncf %134 : vector<8x128xf32> to vector<8x128xbf16>
    %cst_54 = arith.constant dense<0.000000e+00> : vector<8x128xf32>
    %136 = tpu.matmul %135, %20, %cst_54 {dimension_numbers = #tpu.dot_dimension_numbers<[1], [0], [0], [1], [0, 0, 1, 1], [], []>} : vector<8x128xbf16>, vector<128x128xbf16>, vector<8x128xf32> -> vector<8x128xf32>
    %137 = arith.addf %19, %136 : vector<8x128xf32>
    %cst_55 = arith.constant 0.000000e+00 : f32
    %138 = vector.broadcast %cst_55 : f32 to vector<8x128xf32>
    %139 = arith.maximumf %137, %138 : vector<8x128xf32>
    %140 = arith.truncf %139 : vector<8x128xf32> to vector<8x128xbf16>
    %cst_56 = arith.constant dense<0.000000e+00> : vector<8x128xf32>
    %141 = tpu.matmul %140, %21, %cst_56 {dimension_numbers = #tpu.dot_dimension_numbers<[1], [0], [0], [1], [0, 0, 1, 1], [], []>} : vector<8x128xbf16>, vector<128x128xbf16>, vector<8x128xf32> -> vector<8x128xf32>
    %142 = vector.broadcast %22 : vector<1x128xf32> to vector<8x128xf32>
    %143 = arith.addf %141, %142 : vector<8x128xf32>
    %cst_57 = arith.constant 0.000000e+00 : f32
    %144 = vector.broadcast %cst_57 : f32 to vector<8x128xf32>
    %145 = arith.maximumf %143, %144 : vector<8x128xf32>
    %146 = vector.broadcast %23 : vector<1x128xf32> to vector<8x128xf32>
    %147 = arith.mulf %145, %146 : vector<8x128xf32>
    %cst_58 = arith.constant dense<0.000000e+00> : vector<8xf32>
    %148 = vector.multi_reduction <add>, %147, %cst_58 [1] : vector<8x128xf32> to vector<8xf32>
    %149 = vector.shape_cast %148 : vector<8xf32> to vector<8x1xf32>
    %c0_59 = arith.constant 0 : index
    %c768 = arith.constant 768 : index
    %150 = vector.load %arg1[%c0_59, %c768] : memref<8x896xbf16, #tpu.memory_space<vmem>>, vector<8x128xbf16>
    %151 = arith.extf %150 : vector<8x128xbf16> to vector<8x128xf32>
    %152 = arith.mulf %8, %151 : vector<8x128xf32>
    %153 = arith.addf %152, %9 : vector<8x128xf32>
    %154 = arith.mulf %12, %153 : vector<8x128xf32>
    %155 = arith.addf %154, %13 : vector<8x128xf32>
    %156 = arith.truncf %155 : vector<8x128xf32> to vector<8x128xbf16>
    %cst_60 = arith.constant dense<0.000000e+00> : vector<8x128xf32>
    %157 = tpu.matmul %156, %20, %cst_60 {dimension_numbers = #tpu.dot_dimension_numbers<[1], [0], [0], [1], [0, 0, 1, 1], [], []>} : vector<8x128xbf16>, vector<128x128xbf16>, vector<8x128xf32> -> vector<8x128xf32>
    %158 = arith.addf %19, %157 : vector<8x128xf32>
    %cst_61 = arith.constant 0.000000e+00 : f32
    %159 = vector.broadcast %cst_61 : f32 to vector<8x128xf32>
    %160 = arith.maximumf %158, %159 : vector<8x128xf32>
    %161 = arith.truncf %160 : vector<8x128xf32> to vector<8x128xbf16>
    %cst_62 = arith.constant dense<0.000000e+00> : vector<8x128xf32>
    %162 = tpu.matmul %161, %21, %cst_62 {dimension_numbers = #tpu.dot_dimension_numbers<[1], [0], [0], [1], [0, 0, 1, 1], [], []>} : vector<8x128xbf16>, vector<128x128xbf16>, vector<8x128xf32> -> vector<8x128xf32>
    %163 = vector.broadcast %22 : vector<1x128xf32> to vector<8x128xf32>
    %164 = arith.addf %162, %163 : vector<8x128xf32>
    %cst_63 = arith.constant 0.000000e+00 : f32
    %165 = vector.broadcast %cst_63 : f32 to vector<8x128xf32>
    %166 = arith.maximumf %164, %165 : vector<8x128xf32>
    %167 = vector.broadcast %23 : vector<1x128xf32> to vector<8x128xf32>
    %168 = arith.mulf %166, %167 : vector<8x128xf32>
    %cst_64 = arith.constant dense<0.000000e+00> : vector<8xf32>
    %169 = vector.multi_reduction <add>, %168, %cst_64 [1] : vector<8x128xf32> to vector<8xf32>
    %170 = vector.shape_cast %169 : vector<8xf32> to vector<8x1xf32>
    %171 = tpu.concatenate %44, %65, %86, %107, %128, %149, %170 in 1 : vector<8x1xf32>, vector<8x1xf32>, vector<8x1xf32>, vector<8x1xf32>, vector<8x1xf32>, vector<8x1xf32>, vector<8x1xf32> -> vector<8x7xf32>
    %c0_65 = arith.constant 0 : index
    %c0_66 = arith.constant 0 : index
    %172 = vector.load %arg12[%c0_65, %c0_66] : memref<1x1xf32, #tpu.memory_space<vmem>>, vector<1x1xf32>
    %173 = vector.broadcast %172 : vector<1x1xf32> to vector<8x7xf32>
    %174 = arith.addf %171, %173 : vector<8x7xf32>
    %c0_67 = arith.constant 0 : index
    %c0_68 = arith.constant 0 : index
    %175 = vector.load %arg13[%c0_67, %c0_68] : memref<8x7xf32, #tpu.memory_space<vmem>>, vector<8x7xf32>
    tpu.vector_store %arg13[%c0_67, %c0_68], %174 {strides = array<i32>} : memref<8x7xf32, #tpu.memory_space<vmem>>, vector<8x7xf32>,
    return
  }
  func.func @transform_0(%arg0: i32) -> (i32, i32) {
    %c0_i32 = arith.constant 0 : i32
    %c0_i32_0 = arith.constant 0 : i32
    return %arg0, %c0_i32 : i32, i32
  }
  func.func @transform_1(%arg0: i32) -> (i32, i32) {
    %c0_i32 = arith.constant 0 : i32
    %c0_i32_0 = arith.constant 0 : i32
    return %arg0, %c0_i32 : i32, i32
  }
  func.func @transform_2(%arg0: i32) -> (i32, i32) {
    %c0_i32 = arith.constant 0 : i32
    %c0_i32_0 = arith.constant 0 : i32
    return %arg0, %c0_i32 : i32, i32
  }
  func.func @transform_3(%arg0: i32) -> (i32, i32) {
    %c0_i32 = arith.constant 0 : i32
    %c0_i32_0 = arith.constant 0 : i32
    %c0_i32_1 = arith.constant 0 : i32
    return %c0_i32, %c0_i32_0 : i32, i32
  }
  func.func @transform_4(%arg0: i32) -> (i32, i32) {
    %c0_i32 = arith.constant 0 : i32
    %c0_i32_0 = arith.constant 0 : i32
    %c0_i32_1 = arith.constant 0 : i32
    return %c0_i32, %c0_i32_0 : i32, i32
  }
  func.func @transform_5(%arg0: i32) -> (i32, i32) {
    %c0_i32 = arith.constant 0 : i32
    %c0_i32_0 = arith.constant 0 : i32
    %c0_i32_1 = arith.constant 0 : i32
    return %c0_i32, %c0_i32_0 : i32, i32
  }
  func.func @transform_6(%arg0: i32) -> (i32, i32) {
    %c0_i32 = arith.constant 0 : i32
    %c0_i32_0 = arith.constant 0 : i32
    %c0_i32_1 = arith.constant 0 : i32
    return %c0_i32, %c0_i32_0 : i32, i32
  }
  func.func @transform_7(%arg0: i32) -> (i32, i32) {
    %c0_i32 = arith.constant 0 : i32
    %c0_i32_0 = arith.constant 0 : i32
    %c0_i32_1 = arith.constant 0 : i32
    return %c0_i32, %c0_i32_0 : i32, i32
  }
  func.func @transform_8(%arg0: i32) -> (i32, i32) {
    %c0_i32 = arith.constant 0 : i32
    %c0_i32_0 = arith.constant 0 : i32
    %c0_i32_1 = arith.constant 0 : i32
    return %c0_i32, %c0_i32_0 : i32, i32
  }
  func.func @transform_9(%arg0: i32) -> (i32, i32) {
    %c0_i32 = arith.constant 0 : i32
    %c0_i32_0 = arith.constant 0 : i32
    %c0_i32_1 = arith.constant 0 : i32
    return %c0_i32, %c0_i32_0 : i32, i32
  }
  func.func @transform_10(%arg0: i32) -> (i32, i32) {
    %c0_i32 = arith.constant 0 : i32
    %c0_i32_0 = arith.constant 0 : i32
    %c0_i32_1 = arith.constant 0 : i32
    return %c0_i32, %c0_i32_0 : i32, i32
  }
  func.func @transform_11(%arg0: i32) -> (i32, i32) {
    %c0_i32 = arith.constant 0 : i32
    %c0_i32_0 = arith.constant 0 : i32
    %c0_i32_1 = arith.constant 0 : i32
    return %c0_i32, %c0_i32_0 : i32, i32
  }
  func.func @transform_12(%arg0: i32) -> (i32, i32) {
    %c0_i32 = arith.constant 0 : i32
    %c0_i32_0 = arith.constant 0 : i32
    return %arg0, %c0_i32 : i32, i32
  }
}

</mosaic_0001>

<llo_original>
// kernel: decision_maker_forward.1
$region0: #{decision_maker_forward.1}
  #allocation0 [shape = 'u32[]', space=smem, size = 0x4, offset = 0x4, fixed_abs, tag = 'smem constant byte address 0x4 - core index']
  #allocation1 [shape = 'u32[144,128]{1,0:T(1,128)}', space=vmem, size = 0x12000, scoped, tag = 'internal scratch']
  #allocation2 [shape = 'f32[1,1]{1,0:T(1,128)S(1)}', space=vmem, size = 0x200, scoped, tag = 'scoped memory for decision_maker_forward.1']
  %s0 = inlined_call_operand.vmem [shape: bf16[8,896], index: 0, kind: input, shape index: {}]
  %s1 = inlined_call_operand.vmem [shape: bf16[8,128], index: 1, kind: input, shape index: {}]
  %s2 = inlined_call_operand.vmem [shape: bf16[8,128], index: 2, kind: input, shape index: {}]
  %s3 = inlined_call_operand.vmem [shape: bf16[128,512], index: 3, kind: input, shape index: {}]
  %s4 = inlined_call_operand.vmem [shape: f32[1,512], index: 4, kind: input, shape index: {}]
  %s5 = inlined_call_operand.vmem [shape: bf16[128,128], index: 5, kind: input, shape index: {}]
  %s6 = inlined_call_operand.vmem [shape: bf16[128,128], index: 6, kind: input, shape index: {}]
  %s7 = inlined_call_operand.vmem [shape: f32[1,128], index: 7, kind: input, shape index: {}]
  %s8 = inlined_call_operand.vmem [shape: bf16[128,128], index: 8, kind: input, shape index: {}]
  %s9 = inlined_call_operand.vmem [shape: f32[1,128], index: 9, kind: input, shape index: {}]
  %s10 = inlined_call_operand.vmem [shape: f32[1,128], index: 10, kind: input, shape index: {}]
  %s11 = inlined_call_operand.<no memory space> [shape: f32[1,1], index: 11, kind: input, shape index: {}]
  %s12 = inlined_call_operand.hbm [shape: f32[8,7], index: 12, kind: output, shape index: {}]
  %s13 = sld [smem:[#allocation0]]
  $region58: #{decision_maker_forward.1} parent=0
    _
  %s15 = ssub.s32 1, %s13
  %s16 = scalar_select 0, %s15, %s13
  %v17 = vstv %s11
  %18 = vst [vmem:[#allocation2] sm:$0x1] %v17
  $region1: #{decision_maker_forward.1} parent=0
    #allocation3 [shape = 'u8[4096]{0}', space=vmem, size = 0x1000, scoped, tag = 'output window, operand 0, single buffered']
    #allocation4 [shape = 's32[1]{0}', space=sflag, size = 0x4, scoped, tag = 'scoped memory for decision_maker_forward.1']
    %19 = vsyncpa [#allocation4], 0
    // Predicated region
    $region2: #{decision_maker_forward.1} parent=1 // pred_check
      _
    $region3: #{decision_maker_forward.1} parent=1 // pred_check_branch
      %21 = sbr.rel (0) target = $region5
    $region4: #{decision_maker_forward.1} parent=1 // pred_region
      _
    $region5: #{decision_maker_forward.1} parent=1 // pred_fallthru
      _
    // Predicated region
    $region6: #{decision_maker_forward.1} parent=1 // pred_check
      _
    $region7: #{decision_maker_forward.1} parent=1 // pred_check_branch
      %23 = sbr.rel (0) target = $region9
    $region8: #{decision_maker_forward.1} parent=1 // pred_region
      _
    $region9: #{decision_maker_forward.1} parent=1 // pred_fallthru
      _
    // Predicated region
    $region10: #{decision_maker_forward.1} parent=1 // pred_check
      _
    $region11: #{decision_maker_forward.1} parent=1 // pred_check_branch
      %25 = sbr.rel (0) target = $region13
    $region12: #{decision_maker_forward.1} parent=1 // pred_region
      _
    $region13: #{decision_maker_forward.1} parent=1 // pred_fallthru
      _
    // Predicated region
    $region14: #{decision_maker_forward.1} parent=1 // pred_check
      _
    $region15: #{decision_maker_forward.1} parent=1 // pred_check_branch
      %27 = sbr.rel (0) target = $region17
    $region16: #{decision_maker_forward.1} parent=1 // pred_region
      _
    $region17: #{decision_maker_forward.1} parent=1 // pred_fallthru
      _
    // Predicated region
    $region18: #{decision_maker_forward.1} parent=1 // pred_check
      _
    $region19: #{decision_maker_forward.1} parent=1 // pred_check_branch
      %29 = sbr.rel (0) target = $region21
    $region20: #{decision_maker_forward.1} parent=1 // pred_region
      _
    $region21: #{decision_maker_forward.1} parent=1 // pred_fallthru
      _
    // Predicated region
    $region22: #{decision_maker_forward.1} parent=1 // pred_check
      _
    $region23: #{decision_maker_forward.1} parent=1 // pred_check_branch
      %31 = sbr.rel (0) target = $region25
    $region24: #{decision_maker_forward.1} parent=1 // pred_region
      _
    $region25: #{decision_maker_forward.1} parent=1 // pred_fallthru
      _
    // Predicated region
    $region26: #{decision_maker_forward.1} parent=1 // pred_check
      _
    $region27: #{decision_maker_forward.1} parent=1 // pred_check_branch
      %33 = sbr.rel (0) target = $region29
    $region28: #{decision_maker_forward.1} parent=1 // pred_region
      _
    $region29: #{decision_maker_forward.1} parent=1 // pred_fallthru
      _
    // Predicated region
    $region30: #{decision_maker_forward.1} parent=1 // pred_check
      _
    $region31: #{decision_maker_forward.1} parent=1 // pred_check_branch
      %35 = sbr.rel (0) target = $region33
    $region32: #{decision_maker_forward.1} parent=1 // pred_region
      _
    $region33: #{decision_maker_forward.1} parent=1 // pred_fallthru
      _
    // Predicated region
    $region34: #{decision_maker_forward.1} parent=1 // pred_check
      _
    $region35: #{decision_maker_forward.1} parent=1 // pred_check_branch
      %37 = sbr.rel (0) target = $region37
    $region36: #{decision_maker_forward.1} parent=1 // pred_region
      _
    $region37: #{decision_maker_forward.1} parent=1 // pred_fallthru
      _
    // Predicated region
    $region38: #{decision_maker_forward.1} parent=1 // pred_check
      _
    $region39: #{decision_maker_forward.1} parent=1 // pred_check_branch
      %39 = sbr.rel (0) target = $region41
    $region40: #{decision_maker_forward.1} parent=1 // pred_region
      _
    $region41: #{decision_maker_forward.1} parent=1 // pred_fallthru
      _
    // Predicated region
    $region42: #{decision_maker_forward.1} parent=1 // pred_check
      _
    $region43: #{decision_maker_forward.1} parent=1 // pred_check_branch
      %41 = sbr.rel (0) target = $region45
    $region44: #{decision_maker_forward.1} parent=1 // pred_region
      _
    $region45: #{decision_maker_forward.1} parent=1 // pred_fallthru
      _
    // Predicated region
    $region46: #{decision_maker_forward.1} parent=1 // pred_check
      _
    $region47: #{decision_maker_forward.1} parent=1 // pred_check_branch
      %43 = sbr.rel (0) target = $region49
    $region48: #{decision_maker_forward.1} parent=1 // pred_region
      _
    $region49: #{decision_maker_forward.1} parent=1 // pred_fallthru
      _
    %v45 = vld [vmem:[%s1] sm:$0xf]
    %v46 = vld [vmem:[%s3] sm:$0xff]
    %v47 = vld [vmem:[%s3 + $0x8] sm:$0xff]
    %v48 = vld [vmem:[%s3 + $0x10] sm:$0xff]
    %v49 = vld [vmem:[%s3 + $0x18] sm:$0xff]
    %v50 = vld [vmem:[%s3 + $0x20] sm:$0xff]
    %v51 = vld [vmem:[%s3 + $0x28] sm:$0xff]
    %v52 = vld [vmem:[%s3 + $0x30] sm:$0xff]
    %v53 = vld [vmem:[%s3 + $0x38] sm:$0xff]
    %v54 = vld [vmem:[%s3 + $0x40] sm:$0xff]
    %v55 = vld [vmem:[%s3 + $0x48] sm:$0xff]
    %v56 = vld [vmem:[%s3 + $0x50] sm:$0xff]
    %v57 = vld [vmem:[%s3 + $0x58] sm:$0xff]
    %v58 = vld [vmem:[%s3 + $0x60] sm:$0xff]
    %v59 = vld [vmem:[%s3 + $0x68] sm:$0xff]
    %v60 = vld [vmem:[%s3 + $0x70] sm:$0xff]
    %v61 = vld [vmem:[%s3 + $0x78] sm:$0xff]
    %v62 = vld [vmem:[%s3 + $0x80] sm:$0xff]
    %v63 = vld [vmem:[%s3 + $0x88] sm:$0xff]
    %v64 = vld [vmem:[%s3 + $0x90] sm:$0xff]
    %v65 = vld [vmem:[%s3 + $0x98] sm:$0xff]
    %v66 = vld [vmem:[%s3 + $0xa0] sm:$0xff]
    %v67 = vld [vmem:[%s3 + $0xa8] sm:$0xff]
    %v68 = vld [vmem:[%s3 + $0xb0] sm:$0xff]
    %v69 = vld [vmem:[%s3 + $0xb8] sm:$0xff]
    %v70 = vld [vmem:[%s3 + $0xc0] sm:$0xff]
    %v71 = vld [vmem:[%s3 + $0xc8] sm:$0xff]
    %v72 = vld [vmem:[%s3 + $0xd0] sm:$0xff]
    %v73 = vld [vmem:[%s3 + $0xd8] sm:$0xff]
    %v74 = vld [vmem:[%s3 + $0xe0] sm:$0xff]
    %v75 = vld [vmem:[%s3 + $0xe8] sm:$0xff]
    %v76 = vld [vmem:[%s3 + $0xf0] sm:$0xff]
    %v77 = vld [vmem:[%s3 + $0xf8] sm:$0xff]
    %v78 = vld [vmem:[%s4] sm:$0xf]
    %v80 = vlaneseq
    %v81 = vshrl.u32 %v80, 7
    %v82 = vsub.s32 0, %v81
    %v83 = vrot.slane %v78, %v82
    %v84 = vlaneseq
    %v85 = vshrl.u32 %v84, 7
    %v86 = vsub.s32 1, %v85
    %v87 = vrot.slane %v78, %v86
    %v88 = vlaneseq
    %v89 = vshrl.u32 %v88, 7
    %v90 = vsub.s32 2, %v89
    %v91 = vrot.slane %v78, %v90
    %v92 = vlaneseq
    %v93 = vshrl.u32 %v92, 7
    %v94 = vsub.s32 3, %v93
    %v95 = vrot.slane %v78, %v94
    %v132 = vunpack.c.l.b16 %v46
    %v133 = vunpack.c.h.b16 %v46
    %v134 = vunpack.c.l.b16 %v47
    %v135 = vunpack.c.h.b16 %v47
    %v136 = vunpack.c.l.b16 %v48
    %v137 = vunpack.c.h.b16 %v48
    %v138 = vunpack.c.l.b16 %v49
    %v139 = vunpack.c.h.b16 %v49
    %v140 = vunpack.c.l.b16 %v50
    %v141 = vunpack.c.h.b16 %v50
    %v142 = vunpack.c.l.b16 %v51
    %v143 = vunpack.c.h.b16 %v51
    %v144 = vunpack.c.l.b16 %v52
    %v145 = vunpack.c.h.b16 %v52
    %v146 = vunpack.c.l.b16 %v53
    %v147 = vunpack.c.h.b16 %v53
    %v148 = vunpack.c.l.b16 %v54
    %v149 = vunpack.c.h.b16 %v54
    %v150 = vunpack.c.l.b16 %v55
    %v151 = vunpack.c.h.b16 %v55
    %v152 = vunpack.c.l.b16 %v56
    %v153 = vunpack.c.h.b16 %v56
    %v154 = vunpack.c.l.b16 %v57
    %v155 = vunpack.c.h.b16 %v57
    %v156 = vunpack.c.l.b16 %v58
    %v157 = vunpack.c.h.b16 %v58
    %v158 = vunpack.c.l.b16 %v59
    %v159 = vunpack.c.h.b16 %v59
    %v160 = vunpack.c.l.b16 %v60
    %v161 = vunpack.c.h.b16 %v60
    %v162 = vunpack.c.l.b16 %v61
    %v163 = vunpack.c.h.b16 %v61
    %v164 = vunpack.c.l.b16 %v62
    %v165 = vunpack.c.h.b16 %v62
    %v166 = vunpack.c.l.b16 %v63
    %v167 = vunpack.c.h.b16 %v63
    %v168 = vunpack.c.l.b16 %v64
    %v169 = vunpack.c.h.b16 %v64
    %v170 = vunpack.c.l.b16 %v65
    %v171 = vunpack.c.h.b16 %v65
    %v172 = vunpack.c.l.b16 %v66
    %v173 = vunpack.c.h.b16 %v66
    %v174 = vunpack.c.l.b16 %v67
    %v175 = vunpack.c.h.b16 %v67
    %v176 = vunpack.c.l.b16 %v68
    %v177 = vunpack.c.h.b16 %v68
    %v178 = vunpack.c.l.b16 %v69
    %v179 = vunpack.c.h.b16 %v69
    %v180 = vunpack.c.l.b16 %v70
    %v181 = vunpack.c.h.b16 %v70
    %v182 = vunpack.c.l.b16 %v71
    %v183 = vunpack.c.h.b16 %v71
    %v184 = vunpack.c.l.b16 %v72
    %v185 = vunpack.c.h.b16 %v72
    %v186 = vunpack.c.l.b16 %v73
    %v187 = vunpack.c.h.b16 %v73
    %v188 = vunpack.c.l.b16 %v74
    %v189 = vunpack.c.h.b16 %v74
    %v190 = vunpack.c.l.b16 %v75
    %v191 = vunpack.c.h.b16 %v75
    %v192 = vunpack.c.l.b16 %v76
    %v193 = vunpack.c.h.b16 %v76
    %v194 = vunpack.c.l.b16 %v77
    %v195 = vunpack.c.h.b16 %v77
    %v196 = vpack.c.b16 %v136, %v132
    %v197 = vpack.c.b16 %v137, %v133
    %v198 = vpack.c.b16 %v138, %v134
    %v199 = vpack.c.b16 %v139, %v135
    %v200 = vpack.c.b16 %v144, %v140
    %v201 = vpack.c.b16 %v145, %v141
    %v202 = vpack.c.b16 %v146, %v142
    %v203 = vpack.c.b16 %v147, %v143
    %v204 = vpack.c.b16 %v152, %v148
    %v205 = vpack.c.b16 %v153, %v149
    %v206 = vpack.c.b16 %v154, %v150
    %v207 = vpack.c.b16 %v155, %v151
    %v208 = vpack.c.b16 %v160, %v156
    %v209 = vpack.c.b16 %v161, %v157
    %v210 = vpack.c.b16 %v162, %v158
    %v211 = vpack.c.b16 %v163, %v159
    %v212 = vpack.c.b16 %v168, %v164
    %v213 = vpack.c.b16 %v169, %v165
    %v214 = vpack.c.b16 %v170, %v166
    %v215 = vpack.c.b16 %v171, %v167
    %v216 = vpack.c.b16 %v176, %v172
    %v217 = vpack.c.b16 %v177, %v173
    %v218 = vpack.c.b16 %v178, %v174
    %v219 = vpack.c.b16 %v179, %v175
    %v220 = vpack.c.b16 %v184, %v180
    %v221 = vpack.c.b16 %v185, %v181
    %v222 = vpack.c.b16 %v186, %v182
    %v223 = vpack.c.b16 %v187, %v183
    %v224 = vpack.c.b16 %v192, %v188
    %v225 = vpack.c.b16 %v193, %v189
    %v226 = vpack.c.b16 %v194, %v190
    %v227 = vpack.c.b16 %v195, %v191
    %260 = vmatprep.subr.bf16.mxu0 %v197
    %261 = vmatpush1.bf16.msra.mxu0 %v196
    %262 = vmatprep.subr.bf16.mxu0 %v201
    %263 = vmatpush1.bf16.msra.mxu0 %v200
    %264 = vmatprep.subr.bf16.mxu0 %v205
    %265 = vmatpush1.bf16.msra.mxu0 %v204
    %266 = vmatprep.subr.bf16.mxu0 %v209
    %267 = vmatpush1.bf16.msra.mxu0 %v208
    %268 = vmatprep.subr.bf16.mxu0 %v213
    %269 = vmatpush1.bf16.msra.mxu0 %v212
    %270 = vmatprep.subr.bf16.mxu0 %v217
    %271 = vmatpush1.bf16.msra.mxu0 %v216
    %272 = vmatprep.subr.bf16.mxu0 %v221
    %273 = vmatpush1.bf16.msra.mxu0 %v220
    %274 = vmatprep.subr.bf16.mxu0 %v225
    %275 = vmatpush1.bf16.msra.mxu0 %v224
    %276 = vmatprep.subr.bf16.mxu0 0
    %277 = vmatpush1.bf16.msra.mxu0 0
    %278 = vmatprep.subr.bf16.mxu0 0
    %279 = vmatpush1.bf16.msra.mxu0 0
    %280 = vmatprep.subr.bf16.mxu0 0
    %281 = vmatpush1.bf16.msra.mxu0 0
    %282 = vmatprep.subr.bf16.mxu0 0
    %283 = vmatpush1.bf16.msra.mxu0 0
    %284 = vmatprep.subr.bf16.mxu0 0
    %285 = vmatpush1.bf16.msra.mxu0 0
    %286 = vmatprep.subr.bf16.mxu0 0
    %287 = vmatpush1.bf16.msra.mxu0 0
    %288 = vmatprep.subr.bf16.mxu0 0
    %289 = vmatpush1.bf16.msra.mxu0 0
    %290 = vmatprep.subr.bf16.mxu0 0
    %291 = vmatpush1.bf16.msra.mxu0 0
    %292 = vmatprep.mubr.bf16.mxu0 0
    %293 = vmatmul.mubr.bf16.gmra.mrb[0].mxu0 %v45
    %v294 = vpop.f32.mrb[0].mxu0
    %v295 = vadd.f32 %v83, %v294
    %v296 = vpop.f32.mrb[0].mxu0
    %v297 = vadd.f32 %v87, %v296
    %v298 = vpop.f32.mrb[0].mxu0
    %v299 = vpop.f32.mrb[0].mxu0
    %300 = vdwg.mxu0
    %301 = vmatprep.subr.bf16.mxu0 %v199
    %302 = vmatpush1.bf16.msra.mxu0 %v198
    %303 = vmatprep.subr.bf16.mxu0 %v203
    %304 = vmatpush1.bf16.msra.mxu0 %v202
    %305 = vmatprep.subr.bf16.mxu0 %v207
    %306 = vmatpush1.bf16.msra.mxu0 %v206
    %307 = vmatprep.subr.bf16.mxu0 %v211
    %308 = vmatpush1.bf16.msra.mxu0 %v210
    %309 = vmatprep.subr.bf16.mxu0 %v215
    %310 = vmatpush1.bf16.msra.mxu0 %v214
    %311 = vmatprep.subr.bf16.mxu0 %v219
    %312 = vmatpush1.bf16.msra.mxu0 %v218
    %313 = vmatprep.subr.bf16.mxu0 %v223
    %314 = vmatpush1.bf16.msra.mxu0 %v222
    %315 = vmatprep.subr.bf16.mxu0 %v227
    %316 = vmatpush1.bf16.msra.mxu0 %v226
    %317 = vmatprep.subr.bf16.mxu0 0
    %318 = vmatpush1.bf16.msra.mxu0 0
    %319 = vmatprep.subr.bf16.mxu0 0
    %320 = vmatpush1.bf16.msra.mxu0 0
    %321 = vmatprep.subr.bf16.mxu0 0
    %322 = vmatpush1.bf16.msra.mxu0 0
    %323 = vmatprep.subr.bf16.mxu0 0
    %324 = vmatpush1.bf16.msra.mxu0 0
    %325 = vmatprep.subr.bf16.mxu0 0
    %326 = vmatpush1.bf16.msra.mxu0 0
    %327 = vmatprep.subr.bf16.mxu0 0
    %328 = vmatpush1.bf16.msra.mxu0 0
    %329 = vmatprep.subr.bf16.mxu0 0
    %330 = vmatpush1.bf16.msra.mxu0 0
    %331 = vmatprep.subr.bf16.mxu0 0
    %332 = vmatpush1.bf16.msra.mxu0 0
    %333 = vmatprep.mubr.bf16.mxu0 0
    %334 = vmatmul.mubr.bf16.gmra.mrb[0].mxu0 %v45
    %v335 = vpop.f32.mrb[0].mxu0
    %v336 = vadd.f32 %v91, %v335
    %v337 = vpop.f32.mrb[0].mxu0
    %v338 = vadd.f32 %v95, %v337
    %v339 = vpop.f32.mrb[0].mxu0
    %v340 = vpop.f32.mrb[0].mxu0
    %341 = vdwg.mxu0
    %v342 = vadd.f32 %v295, 1.0
    %v343 = vadd.f32 %v336, 1.0
    %v344 = vld [vmem:[%s2] sm:$0xf]
    %v345 = vld [vmem:[%s5] sm:$0xf]
    %v346 = vld [vmem:[%s5 + $0x4] sm:$0xf]
    %v347 = vld [vmem:[%s5 + $0x8] sm:$0xf]
    %v348 = vld [vmem:[%s5 + $0xc] sm:$0xf]
    %v349 = vld [vmem:[%s5 + $0x10] sm:$0xf]
    %v350 = vld [vmem:[%s5 + $0x14] sm:$0xf]
    %v351 = vld [vmem:[%s5 + $0x18] sm:$0xf]
    %v352 = vld [vmem:[%s5 + $0x1c] sm:$0xf]
    %v353 = vld [vmem:[%s5 + $0x20] sm:$0xf]
    %v354 = vld [vmem:[%s5 + $0x24] sm:$0xf]
    %v355 = vld [vmem:[%s5 + $0x28] sm:$0xf]
    %v356 = vld [vmem:[%s5 + $0x2c] sm:$0xf]
    %v357 = vld [vmem:[%s5 + $0x30] sm:$0xf]
    %v358 = vld [vmem:[%s5 + $0x34] sm:$0xf]
    %v359 = vld [vmem:[%s5 + $0x38] sm:$0xf]
    %v360 = vld [vmem:[%s5 + $0x3c] sm:$0xf]
    %v361 = vld [vmem:[%s7] sm:$0x1]
    %v363 = vlaneseq
    %v364 = vshrl.u32 %v363, 7
    %v365 = vsub.s32 0, %v364
    %v366 = vrot.slane %v361, %v365
    %v384 = vunpack.c.l.b16 %v345
    %v385 = vunpack.c.l.b16 %v346
    %v386 = vunpack.c.l.b16 %v347
    %v387 = vunpack.c.l.b16 %v348
    %v388 = vunpack.c.l.b16 %v349
    %v389 = vunpack.c.l.b16 %v350
    %v390 = vunpack.c.l.b16 %v351
    %v391 = vunpack.c.l.b16 %v352
    %v392 = vunpack.c.l.b16 %v353
    %v393 = vunpack.c.l.b16 %v354
    %v394 = vunpack.c.l.b16 %v355
    %v395 = vunpack.c.l.b16 %v356
    %v396 = vunpack.c.l.b16 %v357
    %v397 = vunpack.c.l.b16 %v358
    %v398 = vunpack.c.l.b16 %v359
    %v399 = vunpack.c.l.b16 %v360
    %v400 = vpack.c.b16 %v385, %v384
    %v401 = vpack.c.b16 %v387, %v386
    %v402 = vpack.c.b16 %v389, %v388
    %v403 = vpack.c.b16 %v391, %v390
    %v404 = vpack.c.b16 %v393, %v392
    %v405 = vpack.c.b16 %v395, %v394
    %v406 = vpack.c.b16 %v397, %v396
    %v407 = vpack.c.b16 %v399, %v398
    %416 = vmatprep.subr.bf16.mxu0 0
    %417 = vmatpush1.bf16.msra.mxu0 %v400
    %418 = vmatprep.subr.bf16.mxu0 0
    %419 = vmatpush1.bf16.msra.mxu0 %v401
    %420 = vmatprep.subr.bf16.mxu0 0
    %421 = vmatpush1.bf16.msra.mxu0 %v402
    %422 = vmatprep.subr.bf16.mxu0 0
    %423 = vmatpush1.bf16.msra.mxu0 %v403
    %424 = vmatprep.subr.bf16.mxu0 0
    %425 = vmatpush1.bf16.msra.mxu0 %v404
    %426 = vmatprep.subr.bf16.mxu0 0
    %427 = vmatpush1.bf16.msra.mxu0 %v405
    %428 = vmatprep.subr.bf16.mxu0 0
    %429 = vmatpush1.bf16.msra.mxu0 %v406
    %430 = vmatprep.subr.bf16.mxu0 0
    %431 = vmatpush1.bf16.msra.mxu0 %v407
    %432 = vmatprep.subr.bf16.mxu0 0
    %433 = vmatpush1.bf16.msra.mxu0 0
    %434 = vmatprep.subr.bf16.mxu0 0
    %435 = vmatpush1.bf16.msra.mxu0 0
    %436 = vmatprep.subr.bf16.mxu0 0
    %437 = vmatpush1.bf16.msra.mxu0 0
    %438 = vmatprep.subr.bf16.mxu0 0
    %439 = vmatpush1.bf16.msra.mxu0 0
    %440 = vmatprep.subr.bf16.mxu0 0
    %441 = vmatpush1.bf16.msra.mxu0 0
    %442 = vmatprep.subr.bf16.mxu0 0
    %443 = vmatpush1.bf16.msra.mxu0 0
    %444 = vmatprep.subr.bf16.mxu0 0
    %445 = vmatpush1.bf16.msra.mxu0 0
    %446 = vmatprep.subr.bf16.mxu0 0
    %447 = vmatpush1.bf16.msra.mxu0 0
    %448 = vmatprep.mubr.bf16.mxu0 0
    %449 = vmatmul.mubr.bf16.gmra.mrb[0].mxu0 %v344
    %v450 = vpop.f32.mrb[0].mxu0
    %v451 = vadd.f32 %v366, %v450
    %v452 = vpop.f32.mrb[0].mxu0
    %v453 = vpop.f32.mrb[0].mxu0
    %v454 = vpop.f32.mrb[0].mxu0
    %455 = vdwg.mxu0
    %v456 = vld [vmem:[%s6] sm:$0xf]
    %v457 = vld [vmem:[%s6 + $0x4] sm:$0xf]
    %v458 = vld [vmem:[%s6 + $0x8] sm:$0xf]
    %v459 = vld [vmem:[%s6 + $0xc] sm:$0xf]
    %v460 = vld [vmem:[%s6 + $0x10] sm:$0xf]
    %v461 = vld [vmem:[%s6 + $0x14] sm:$0xf]
    %v462 = vld [vmem:[%s6 + $0x18] sm:$0xf]
    %v463 = vld [vmem:[%s6 + $0x1c] sm:$0xf]
    %v464 = vld [vmem:[%s6 + $0x20] sm:$0xf]
    %v465 = vld [vmem:[%s6 + $0x24] sm:$0xf]
    %v466 = vld [vmem:[%s6 + $0x28] sm:$0xf]
    %v467 = vld [vmem:[%s6 + $0x2c] sm:$0xf]
    %v468 = vld [vmem:[%s6 + $0x30] sm:$0xf]
    %v469 = vld [vmem:[%s6 + $0x34] sm:$0xf]
    %v470 = vld [vmem:[%s6 + $0x38] sm:$0xf]
    %v471 = vld [vmem:[%s6 + $0x3c] sm:$0xf]
    %v472 = vld [vmem:[%s8] sm:$0xf]
    %v473 = vld [vmem:[%s8 + $0x4] sm:$0xf]
    %v474 = vld [vmem:[%s8 + $0x8] sm:$0xf]
    %v475 = vld [vmem:[%s8 + $0xc] sm:$0xf]
    %v476 = vld [vmem:[%s8 + $0x10] sm:$0xf]
    %v477 = vld [vmem:[%s8 + $0x14] sm:$0xf]
    %v478 = vld [vmem:[%s8 + $0x18] sm:$0xf]
    %v479 = vld [vmem:[%s8 + $0x1c] sm:$0xf]
    %v480 = vld [vmem:[%s8 + $0x20] sm:$0xf]
    %v481 = vld [vmem:[%s8 + $0x24] sm:$0xf]
    %v482 = vld [vmem:[%s8 + $0x28] sm:$0xf]
    %v483 = vld [vmem:[%s8 + $0x2c] sm:$0xf]
    %v484 = vld [vmem:[%s8 + $0x30] sm:$0xf]
    %v485 = vld [vmem:[%s8 + $0x34] sm:$0xf]
    %v486 = vld [vmem:[%s8 + $0x38] sm:$0xf]
    %v487 = vld [vmem:[%s8 + $0x3c] sm:$0xf]
    %v488 = vld [vmem:[%s9] sm:$0x1]
    %v489 = vld [vmem:[%s10] sm:$0x1]
    %v490 = vld [vmem:[%s0] sm:$0xf]
    %v491 = vunpack.c.l.bf16 %v490
    %v492 = vmul.f32 %v342, %v491
    %v493 = vadd.f32 %v492, %v297
    %v494 = vmul.f32 %v343, %v493
    %v495 = vadd.f32 %v494, %v338
    %v496 = vpack.c.bf16 %v495, %v495
    %v513 = vunpack.c.l.b16 %v456
    %v514 = vunpack.c.l.b16 %v457
    %v515 = vunpack.c.l.b16 %v458
    %v516 = vunpack.c.l.b16 %v459
    %v517 = vunpack.c.l.b16 %v460
    %v518 = vunpack.c.l.b16 %v461
    %v519 = vunpack.c.l.b16 %v462
    %v520 = vunpack.c.l.b16 %v463
    %v521 = vunpack.c.l.b16 %v464
    %v522 = vunpack.c.l.b16 %v465
    %v523 = vunpack.c.l.b16 %v466
    %v524 = vunpack.c.l.b16 %v467
    %v525 = vunpack.c.l.b16 %v468
    %v526 = vunpack.c.l.b16 %v469
    %v527 = vunpack.c.l.b16 %v470
    %v528 = vunpack.c.l.b16 %v471
    %v529 = vpack.c.b16 %v514, %v513
    %v530 = vpack.c.b16 %v516, %v515
    %v531 = vpack.c.b16 %v518, %v517
    %v532 = vpack.c.b16 %v520, %v519
    %v533 = vpack.c.b16 %v522, %v521
    %v534 = vpack.c.b16 %v524, %v523
    %v535 = vpack.c.b16 %v526, %v525
    %v536 = vpack.c.b16 %v528, %v527
    %545 = vmatprep.subr.bf16.mxu0 0
    %546 = vmatpush1.bf16.msra.mxu0 %v529
    %547 = vmatprep.subr.bf16.mxu0 0
    %548 = vmatpush1.bf16.msra.mxu0 %v530
    %549 = vmatprep.subr.bf16.mxu0 0
    %550 = vmatpush1.bf16.msra.mxu0 %v531
    %551 = vmatprep.subr.bf16.mxu0 0
    %552 = vmatpush1.bf16.msra.mxu0 %v532
    %553 = vmatprep.subr.bf16.mxu0 0
    %554 = vmatpush1.bf16.msra.mxu0 %v533
    %555 = vmatprep.subr.bf16.mxu0 0
    %556 = vmatpush1.bf16.msra.mxu0 %v534
    %557 = vmatprep.subr.bf16.mxu0 0
    %558 = vmatpush1.bf16.msra.mxu0 %v535
    %559 = vmatprep.subr.bf16.mxu0 0
    %560 = vmatpush1.bf16.msra.mxu0 %v536
    %561 = vmatprep.subr.bf16.mxu0 0
    %562 = vmatpush1.bf16.msra.mxu0 0
    %563 = vmatprep.subr.bf16.mxu0 0
    %564 = vmatpush1.bf16.msra.mxu0 0
    %565 = vmatprep.subr.bf16.mxu0 0
    %566 = vmatpush1.bf16.msra.mxu0 0
    %567 = vmatprep.subr.bf16.mxu0 0
    %568 = vmatpush1.bf16.msra.mxu0 0
    %569 = vmatprep.subr.bf16.mxu0 0
    %570 = vmatpush1.bf16.msra.mxu0 0
    %571 = vmatprep.subr.bf16.mxu0 0
    %572 = vmatpush1.bf16.msra.mxu0 0
    %573 = vmatprep.subr.bf16.mxu0 0
    %574 = vmatpush1.bf16.msra.mxu0 0
    %575 = vmatprep.subr.bf16.mxu0 0
    %576 = vmatpush1.bf16.msra.mxu0 0
    %577 = vmatprep.mubr.bf16.mxu0 0
    %578 = vmatmul.mubr.bf16.gmra.mrb[0].mxu0 %v496
    %v579 = vpop.f32.mrb[0].mxu0
    %v580 = vadd.f32 0.0, %v579
    %v581 = vpop.f32.mrb[0].mxu0
    %v582 = vpop.f32.mrb[0].mxu0
    %v583 = vpop.f32.mrb[0].mxu0
    %584 = vdwg.mxu0
    %v585 = vadd.f32 %v451, %v580
    %v586 = vmax.f32 %v585, 0.0
    %v587 = vpack.c.bf16 %v586, %v586
    %v589 = vlaneseq
    %v590 = vshrl.u32 %v589, 7
    %v591 = vsub.s32 0, %v590
    %v592 = vrot.slane %v488, %v591
    %v610 = vunpack.c.l.b16 %v472
    %v611 = vunpack.c.l.b16 %v473
    %v612 = vunpack.c.l.b16 %v474
    %v613 = vunpack.c.l.b16 %v475
    %v614 = vunpack.c.l.b16 %v476
    %v615 = vunpack.c.l.b16 %v477
    %v616 = vunpack.c.l.b16 %v478
    %v617 = vunpack.c.l.b16 %v479
    %v618 = vunpack.c.l.b16 %v480
    %v619 = vunpack.c.l.b16 %v481
    %v620 = vunpack.c.l.b16 %v482
    %v621 = vunpack.c.l.b16 %v483
    %v622 = vunpack.c.l.b16 %v484
    %v623 = vunpack.c.l.b16 %v485
    %v624 = vunpack.c.l.b16 %v486
    %v625 = vunpack.c.l.b16 %v487
    %v626 = vpack.c.b16 %v611, %v610
    %v627 = vpack.c.b16 %v613, %v612
    %v628 = vpack.c.b16 %v615, %v614
    %v629 = vpack.c.b16 %v617, %v616
    %v630 = vpack.c.b16 %v619, %v618
    %v631 = vpack.c.b16 %v621, %v620
    %v632 = vpack.c.b16 %v623, %v622
    %v633 = vpack.c.b16 %v625, %v624
    %642 = vmatprep.subr.bf16.mxu0 0
    %643 = vmatpush1.bf16.msra.mxu0 %v626
    %644 = vmatprep.subr.bf16.mxu0 0
    %645 = vmatpush1.bf16.msra.mxu0 %v627
    %646 = vmatprep.subr.bf16.mxu0 0
    %647 = vmatpush1.bf16.msra.mxu0 %v628
    %648 = vmatprep.subr.bf16.mxu0 0
    %649 = vmatpush1.bf16.msra.mxu0 %v629
    %650 = vmatprep.subr.bf16.mxu0 0
    %651 = vmatpush1.bf16.msra.mxu0 %v630
    %652 = vmatprep.subr.bf16.mxu0 0
    %653 = vmatpush1.bf16.msra.mxu0 %v631
    %654 = vmatprep.subr.bf16.mxu0 0
    %655 = vmatpush1.bf16.msra.mxu0 %v632
    %656 = vmatprep.subr.bf16.mxu0 0
    %657 = vmatpush1.bf16.msra.mxu0 %v633
    %658 = vmatprep.subr.bf16.mxu0 0
    %659 = vmatpush1.bf16.msra.mxu0 0
    %660 = vmatprep.subr.bf16.mxu0 0
    %661 = vmatpush1.bf16.msra.mxu0 0
    %662 = vmatprep.subr.bf16.mxu0 0
    %663 = vmatpush1.bf16.msra.mxu0 0
    %664 = vmatprep.subr.bf16.mxu0 0
    %665 = vmatpush1.bf16.msra.mxu0 0
    %666 = vmatprep.subr.bf16.mxu0 0
    %667 = vmatpush1.bf16.msra.mxu0 0
    %668 = vmatprep.subr.bf16.mxu0 0
    %669 = vmatpush1.bf16.msra.mxu0 0
    %670 = vmatprep.subr.bf16.mxu0 0
    %671 = vmatpush1.bf16.msra.mxu0 0
    %672 = vmatprep.subr.bf16.mxu0 0
    %673 = vmatpush1.bf16.msra.mxu0 0
    %674 = vmatprep.mubr.bf16.mxu0 0
    %675 = vmatmul.mubr.bf16.gmra.mrb[0].mxu0 %v587
    %v676 = vpop.f32.mrb[0].mxu0
    %v677 = vadd.f32 %v592, %v676
    %v678 = vpop.f32.mrb[0].mxu0
    %v679 = vpop.f32.mrb[0].mxu0
    %v680 = vpop.f32.mrb[0].mxu0
    %681 = vdwg.mxu0
    %v682 = vmax.f32 %v677, 0.0
    %v684 = vlaneseq
    %v685 = vshrl.u32 %v684, 7
    %v686 = vsub.s32 0, %v685
    %v687 = vrot.slane %v489, %v686
    %v689 = vmul.f32 %v682, %v687
    %690 = vadd.xlane.f32.xlu0 %v689
    %v691 = vpop.xlane.xlu0 %690
    %v692 = vld [vmem:[%s0 + $0x4] sm:$0xf]
    %v693 = vunpack.c.l.bf16 %v692
    %v694 = vmul.f32 %v342, %v693
    %v695 = vadd.f32 %v694, %v297
    %v696 = vmul.f32 %v343, %v695
    %v697 = vadd.f32 %v696, %v338
    %v698 = vpack.c.bf16 %v697, %v697
    %699 = vmatprep.subr.bf16.mxu0 0
    %700 = vmatpush1.bf16.msra.mxu0 %v529
    %701 = vmatprep.subr.bf16.mxu0 0
    %702 = vmatpush1.bf16.msra.mxu0 %v530
    %703 = vmatprep.subr.bf16.mxu0 0
    %704 = vmatpush1.bf16.msra.mxu0 %v531
    %705 = vmatprep.subr.bf16.mxu0 0
    %706 = vmatpush1.bf16.msra.mxu0 %v532
    %707 = vmatprep.subr.bf16.mxu0 0
    %708 = vmatpush1.bf16.msra.mxu0 %v533
    %709 = vmatprep.subr.bf16.mxu0 0
    %710 = vmatpush1.bf16.msra.mxu0 %v534
    %711 = vmatprep.subr.bf16.mxu0 0
    %712 = vmatpush1.bf16.msra.mxu0 %v535
    %713 = vmatprep.subr.bf16.mxu0 0
    %714 = vmatpush1.bf16.msra.mxu0 %v536
    %715 = vmatprep.subr.bf16.mxu0 0
    %716 = vmatpush1.bf16.msra.mxu0 0
    %717 = vmatprep.subr.bf16.mxu0 0
    %718 = vmatpush1.bf16.msra.mxu0 0
    %719 = vmatprep.subr.bf16.mxu0 0
    %720 = vmatpush1.bf16.msra.mxu0 0
    %721 = vmatprep.subr.bf16.mxu0 0
    %722 = vmatpush1.bf16.msra.mxu0 0
    %723 = vmatprep.subr.bf16.mxu0 0
    %724 = vmatpush1.bf16.msra.mxu0 0
    %725 = vmatprep.subr.bf16.mxu0 0
    %726 = vmatpush1.bf16.msra.mxu0 0
    %727 = vmatprep.subr.bf16.mxu0 0
    %728 = vmatpush1.bf16.msra.mxu0 0
    %729 = vmatprep.subr.bf16.mxu0 0
    %730 = vmatpush1.bf16.msra.mxu0 0
    %731 = vmatprep.mubr.bf16.mxu0 0
    %732 = vmatmul.mubr.bf16.gmra.mrb[0].mxu0 %v698
    %v733 = vpop.f32.mrb[0].mxu0
    %v734 = vadd.f32 0.0, %v733
    %v735 = vpop.f32.mrb[0].mxu0
    %v736 = vpop.f32.mrb[0].mxu0
    %v737 = vpop.f32.mrb[0].mxu0
    %738 = vdwg.mxu0
    %v739 = vadd.f32 %v451, %v734
    %v740 = vmax.f32 %v739, 0.0
    %v741 = vpack.c.bf16 %v740, %v740
    %742 = vmatprep.subr.bf16.mxu0 0
    %743 = vmatpush1.bf16.msra.mxu0 %v626
    %744 = vmatprep.subr.bf16.mxu0 0
    %745 = vmatpush1.bf16.msra.mxu0 %v627
    %746 = vmatprep.subr.bf16.mxu0 0
    %747 = vmatpush1.bf16.msra.mxu0 %v628
    %748 = vmatprep.subr.bf16.mxu0 0
    %749 = vmatpush1.bf16.msra.mxu0 %v629
    %750 = vmatprep.subr.bf16.mxu0 0
    %751 = vmatpush1.bf16.msra.mxu0 %v630
    %752 = vmatprep.subr.bf16.mxu0 0
    %753 = vmatpush1.bf16.msra.mxu0 %v631
    %754 = vmatprep.subr.bf16.mxu0 0
    %755 = vmatpush1.bf16.msra.mxu0 %v632
    %756 = vmatprep.subr.bf16.mxu0 0
    %757 = vmatpush1.bf16.msra.mxu0 %v633
    %758 = vmatprep.subr.bf16.mxu0 0
    %759 = vmatpush1.bf16.msra.mxu0 0
    %760 = vmatprep.subr.bf16.mxu0 0
    %761 = vmatpush1.bf16.msra.mxu0 0
    %762 = vmatprep.subr.bf16.mxu0 0
    %763 = vmatpush1.bf16.msra.mxu0 0
    %764 = vmatprep.subr.bf16.mxu0 0
    %765 = vmatpush1.bf16.msra.mxu0 0
    %766 = vmatprep.subr.bf16.mxu0 0
    %767 = vmatpush1.bf16.msra.mxu0 0
    %768 = vmatprep.subr.bf16.mxu0 0
    %769 = vmatpush1.bf16.msra.mxu0 0
    %770 = vmatprep.subr.bf16.mxu0 0
    %771 = vmatpush1.bf16.msra.mxu0 0
    %772 = vmatprep.subr.bf16.mxu0 0
    %773 = vmatpush1.bf16.msra.mxu0 0
    %774 = vmatprep.mubr.bf16.mxu0 0
    %775 = vmatmul.mubr.bf16.gmra.mrb[0].mxu0 %v741
    %v776 = vpop.f32.mrb[0].mxu0
    %v777 = vadd.f32 %v592, %v776
    %v778 = vpop.f32.mrb[0].mxu0
    %v779 = vpop.f32.mrb[0].mxu0
    %v780 = vpop.f32.mrb[0].mxu0
    %781 = vdwg.mxu0
    %v782 = vmax.f32 %v777, 0.0
    %v783 = vmul.f32 %v782, %v687
    %784 = vadd.xlane.f32.xlu0 %v783
    %v785 = vpop.xlane.xlu0 %784
    %v786 = vld [vmem:[%s0 + $0x8] sm:$0xf]
    %v787 = vunpack.c.l.bf16 %v786
    %v788 = vmul.f32 %v342, %v787
    %v789 = vadd.f32 %v788, %v297
    %v790 = vmul.f32 %v343, %v789
    %v791 = vadd.f32 %v790, %v338
    %v792 = vpack.c.bf16 %v791, %v791
    %793 = vmatprep.subr.bf16.mxu0 0
    %794 = vmatpush1.bf16.msra.mxu0 %v529
    %795 = vmatprep.subr.bf16.mxu0 0
    %796 = vmatpush1.bf16.msra.mxu0 %v530
    %797 = vmatprep.subr.bf16.mxu0 0
    %798 = vmatpush1.bf16.msra.mxu0 %v531
    %799 = vmatprep.subr.bf16.mxu0 0
    %800 = vmatpush1.bf16.msra.mxu0 %v532
    %801 = vmatprep.subr.bf16.mxu0 0
    %802 = vmatpush1.bf16.msra.mxu0 %v533
    %803 = vmatprep.subr.bf16.mxu0 0
    %804 = vmatpush1.bf16.msra.mxu0 %v534
    %805 = vmatprep.subr.bf16.mxu0 0
    %806 = vmatpush1.bf16.msra.mxu0 %v535
    %807 = vmatprep.subr.bf16.mxu0 0
    %808 = vmatpush1.bf16.msra.mxu0 %v536
    %809 = vmatprep.subr.bf16.mxu0 0
    %810 = vmatpush1.bf16.msra.mxu0 0
    %811 = vmatprep.subr.bf16.mxu0 0
    %812 = vmatpush1.bf16.msra.mxu0 0
    %813 = vmatprep.subr.bf16.mxu0 0
    %814 = vmatpush1.bf16.msra.mxu0 0
    %815 = vmatprep.subr.bf16.mxu0 0
    %816 = vmatpush1.bf16.msra.mxu0 0
    %817 = vmatprep.subr.bf16.mxu0 0
    %818 = vmatpush1.bf16.msra.mxu0 0
    %819 = vmatprep.subr.bf16.mxu0 0
    %820 = vmatpush1.bf16.msra.mxu0 0
    %821 = vmatprep.subr.bf16.mxu0 0
    %822 = vmatpush1.bf16.msra.mxu0 0
    %823 = vmatprep.subr.bf16.mxu0 0
    %824 = vmatpush1.bf16.msra.mxu0 0
    %825 = vmatprep.mubr.bf16.mxu0 0
    %826 = vmatmul.mubr.bf16.gmra.mrb[0].mxu0 %v792
    %v827 = vpop.f32.mrb[0].mxu0
    %v828 = vadd.f32 0.0, %v827
    %v829 = vpop.f32.mrb[0].mxu0
    %v830 = vpop.f32.mrb[0].mxu0
    %v831 = vpop.f32.mrb[0].mxu0
    %832 = vdwg.mxu0
    %v833 = vadd.f32 %v451, %v828
    %v834 = vmax.f32 %v833, 0.0
    %v835 = vpack.c.bf16 %v834, %v834
    %836 = vmatprep.subr.bf16.mxu0 0
    %837 = vmatpush1.bf16.msra.mxu0 %v626
    %838 = vmatprep.subr.bf16.mxu0 0
    %839 = vmatpush1.bf16.msra.mxu0 %v627
    %840 = vmatprep.subr.bf16.mxu0 0
    %841 = vmatpush1.bf16.msra.mxu0 %v628
    %842 = vmatprep.subr.bf16.mxu0 0
    %843 = vmatpush1.bf16.msra.mxu0 %v629
    %844 = vmatprep.subr.bf16.mxu0 0
    %845 = vmatpush1.bf16.msra.mxu0 %v630
    %846 = vmatprep.subr.bf16.mxu0 0
    %847 = vmatpush1.bf16.msra.mxu0 %v631
    %848 = vmatprep.subr.bf16.mxu0 0
    %849 = vmatpush1.bf16.msra.mxu0 %v632
    %850 = vmatprep.subr.bf16.mxu0 0
    %851 = vmatpush1.bf16.msra.mxu0 %v633
    %852 = vmatprep.subr.bf16.mxu0 0
    %853 = vmatpush1.bf16.msra.mxu0 0
    %854 = vmatprep.subr.bf16.mxu0 0
    %855 = vmatpush1.bf16.msra.mxu0 0
    %856 = vmatprep.subr.bf16.mxu0 0
    %857 = vmatpush1.bf16.msra.mxu0 0
    %858 = vmatprep.subr.bf16.mxu0 0
    %859 = vmatpush1.bf16.msra.mxu0 0
    %860 = vmatprep.subr.bf16.mxu0 0
    %861 = vmatpush1.bf16.msra.mxu0 0
    %862 = vmatprep.subr.bf16.mxu0 0
    %863 = vmatpush1.bf16.msra.mxu0 0
    %864 = vmatprep.subr.bf16.mxu0 0
    %865 = vmatpush1.bf16.msra.mxu0 0
    %866 = vmatprep.subr.bf16.mxu0 0
    %867 = vmatpush1.bf16.msra.mxu0 0
    %868 = vmatprep.mubr.bf16.mxu0 0
    %869 = vmatmul.mubr.bf16.gmra.mrb[0].mxu0 %v835
    %v870 = vpop.f32.mrb[0].mxu0
    %v871 = vadd.f32 %v592, %v870
    %v872 = vpop.f32.mrb[0].mxu0
    %v873 = vpop.f32.mrb[0].mxu0
    %v874 = vpop.f32.mrb[0].mxu0
    %875 = vdwg.mxu0
    %v876 = vmax.f32 %v871, 0.0
    %v877 = vmul.f32 %v876, %v687
    %878 = vadd.xlane.f32.xlu0 %v877
    %v879 = vpop.xlane.xlu0 %878
    %v880 = vld [vmem:[%s0 + $0xc] sm:$0xf]
    %v881 = vunpack.c.l.bf16 %v880
    %v882 = vmul.f32 %v342, %v881
    %v883 = vadd.f32 %v882, %v297
    %v884 = vmul.f32 %v343, %v883
    %v885 = vadd.f32 %v884, %v338
    %v886 = vpack.c.bf16 %v885, %v885
    %887 = vmatprep.subr.bf16.mxu0 0
    %888 = vmatpush1.bf16.msra.mxu0 %v529
    %889 = vmatprep.subr.bf16.mxu0 0
    %890 = vmatpush1.bf16.msra.mxu0 %v530
    %891 = vmatprep.subr.bf16.mxu0 0
    %892 = vmatpush1.bf16.msra.mxu0 %v531
    %893 = vmatprep.subr.bf16.mxu0 0
    %894 = vmatpush1.bf16.msra.mxu0 %v532
    %895 = vmatprep.subr.bf16.mxu0 0
    %896 = vmatpush1.bf16.msra.mxu0 %v533
    %897 = vmatprep.subr.bf16.mxu0 0
    %898 = vmatpush1.bf16.msra.mxu0 %v534
    %899 = vmatprep.subr.bf16.mxu0 0
    %900 = vmatpush1.bf16.msra.mxu0 %v535
    %901 = vmatprep.subr.bf16.mxu0 0
    %902 = vmatpush1.bf16.msra.mxu0 %v536
    %903 = vmatprep.subr.bf16.mxu0 0
    %904 = vmatpush1.bf16.msra.mxu0 0
    %905 = vmatprep.subr.bf16.mxu0 0
    %906 = vmatpush1.bf16.msra.mxu0 0
    %907 = vmatprep.subr.bf16.mxu0 0
    %908 = vmatpush1.bf16.msra.mxu0 0
    %909 = vmatprep.subr.bf16.mxu0 0
    %910 = vmatpush1.bf16.msra.mxu0 0
    %911 = vmatprep.subr.bf16.mxu0 0
    %912 = vmatpush1.bf16.msra.mxu0 0
    %913 = vmatprep.subr.bf16.mxu0 0
    %914 = vmatpush1.bf16.msra.mxu0 0
    %915 = vmatprep.subr.bf16.mxu0 0
    %916 = vmatpush1.bf16.msra.mxu0 0
    %917 = vmatprep.subr.bf16.mxu0 0
    %918 = vmatpush1.bf16.msra.mxu0 0
    %919 = vmatprep.mubr.bf16.mxu0 0
    %920 = vmatmul.mubr.bf16.gmra.mrb[0].mxu0 %v886
    %v921 = vpop.f32.mrb[0].mxu0
    %v922 = vadd.f32 0.0, %v921
    %v923 = vpop.f32.mrb[0].mxu0
    %v924 = vpop.f32.mrb[0].mxu0
    %v925 = vpop.f32.mrb[0].mxu0
    %926 = vdwg.mxu0
    %v927 = vadd.f32 %v451, %v922
    %v928 = vmax.f32 %v927, 0.0
    %v929 = vpack.c.bf16 %v928, %v928
    %930 = vmatprep.subr.bf16.mxu0 0
    %931 = vmatpush1.bf16.msra.mxu0 %v626
    %932 = vmatprep.subr.bf16.mxu0 0
    %933 = vmatpush1.bf16.msra.mxu0 %v627
    %934 = vmatprep.subr.bf16.mxu0 0
    %935 = vmatpush1.bf16.msra.mxu0 %v628
    %936 = vmatprep.subr.bf16.mxu0 0
    %937 = vmatpush1.bf16.msra.mxu0 %v629
    %938 = vmatprep.subr.bf16.mxu0 0
    %939 = vmatpush1.bf16.msra.mxu0 %v630
    %940 = vmatprep.subr.bf16.mxu0 0
    %941 = vmatpush1.bf16.msra.mxu0 %v631
    %942 = vmatprep.subr.bf16.mxu0 0
    %943 = vmatpush1.bf16.msra.mxu0 %v632
    %944 = vmatprep.subr.bf16.mxu0 0
    %945 = vmatpush1.bf16.msra.mxu0 %v633
    %946 = vmatprep.subr.bf16.mxu0 0
    %947 = vmatpush1.bf16.msra.mxu0 0
    %948 = vmatprep.subr.bf16.mxu0 0
    %949 = vmatpush1.bf16.msra.mxu0 0
    %950 = vmatprep.subr.bf16.mxu0 0
    %951 = vmatpush1.bf16.msra.mxu0 0
    %952 = vmatprep.subr.bf16.mxu0 0
    %953 = vmatpush1.bf16.msra.mxu0 0
    %954 = vmatprep.subr.bf16.mxu0 0
    %955 = vmatpush1.bf16.msra.mxu0 0
    %956 = vmatprep.subr.bf16.mxu0 0
    %957 = vmatpush1.bf16.msra.mxu0 0
    %958 = vmatprep.subr.bf16.mxu0 0
    %959 = vmatpush1.bf16.msra.mxu0 0
    %960 = vmatprep.subr.bf16.mxu0 0
    %961 = vmatpush1.bf16.msra.mxu0 0
    %962 = vmatprep.mubr.bf16.mxu0 0
    %963 = vmatmul.mubr.bf16.gmra.mrb[0].mxu0 %v929
    %v964 = vpop.f32.mrb[0].mxu0
    %v965 = vadd.f32 %v592, %v964
    %v966 = vpop.f32.mrb[0].mxu0
    %v967 = vpop.f32.mrb[0].mxu0
    %v968 = vpop.f32.mrb[0].mxu0
    %969 = vdwg.mxu0
    %v970 = vmax.f32 %v965, 0.0
    %v971 = vmul.f32 %v970, %v687
    %972 = vadd.xlane.f32.xlu0 %v971
    %v973 = vpop.xlane.xlu0 %972
    %v974 = vld [vmem:[%s0 + $0x10] sm:$0xf]
    %v975 = vunpack.c.l.bf16 %v974
    %v976 = vmul.f32 %v342, %v975
    %v977 = vadd.f32 %v976, %v297
    %v978 = vmul.f32 %v343, %v977
    %v979 = vadd.f32 %v978, %v338
    %v980 = vpack.c.bf16 %v979, %v979
    %981 = vmatprep.subr.bf16.mxu0 0
    %982 = vmatpush1.bf16.msra.mxu0 %v529
    %983 = vmatprep.subr.bf16.mxu0 0
    %984 = vmatpush1.bf16.msra.mxu0 %v530
    %985 = vmatprep.subr.bf16.mxu0 0
    %986 = vmatpush1.bf16.msra.mxu0 %v531
    %987 = vmatprep.subr.bf16.mxu0 0
    %988 = vmatpush1.bf16.msra.mxu0 %v532
    %989 = vmatprep.subr.bf16.mxu0 0
    %990 = vmatpush1.bf16.msra.mxu0 %v533
    %991 = vmatprep.subr.bf16.mxu0 0
    %992 = vmatpush1.bf16.msra.mxu0 %v534
    %993 = vmatprep.subr.bf16.mxu0 0
    %994 = vmatpush1.bf16.msra.mxu0 %v535
    %995 = vmatprep.subr.bf16.mxu0 0
    %996 = vmatpush1.bf16.msra.mxu0 %v536
    %997 = vmatprep.subr.bf16.mxu0 0
    %998 = vmatpush1.bf16.msra.mxu0 0
    %999 = vmatprep.subr.bf16.mxu0 0
    %1000 = vmatpush1.bf16.msra.mxu0 0
    %1001 = vmatprep.subr.bf16.mxu0 0
    %1002 = vmatpush1.bf16.msra.mxu0 0
    %1003 = vmatprep.subr.bf16.mxu0 0
    %1004 = vmatpush1.bf16.msra.mxu0 0
    %1005 = vmatprep.subr.bf16.mxu0 0
    %1006 = vmatpush1.bf16.msra.mxu0 0
    %1007 = vmatprep.subr.bf16.mxu0 0
    %1008 = vmatpush1.bf16.msra.mxu0 0
    %1009 = vmatprep.subr.bf16.mxu0 0
    %1010 = vmatpush1.bf16.msra.mxu0 0
    %1011 = vmatprep.subr.bf16.mxu0 0
    %1012 = vmatpush1.bf16.msra.mxu0 0
    %1013 = vmatprep.mubr.bf16.mxu0 0
    %1014 = vmatmul.mubr.bf16.gmra.mrb[0].mxu0 %v980
    %v1015 = vpop.f32.mrb[0].mxu0
    %v1016 = vadd.f32 0.0, %v1015
    %v1017 = vpop.f32.mrb[0].mxu0
    %v1018 = vpop.f32.mrb[0].mxu0
    %v1019 = vpop.f32.mrb[0].mxu0
    %1020 = vdwg.mxu0
    %v1021 = vadd.f32 %v451, %v1016
    %v1022 = vmax.f32 %v1021, 0.0
    %v1023 = vpack.c.bf16 %v1022, %v1022
    %1024 = vmatprep.subr.bf16.mxu0 0
    %1025 = vmatpush1.bf16.msra.mxu0 %v626
    %1026 = vmatprep.subr.bf16.mxu0 0
    %1027 = vmatpush1.bf16.msra.mxu0 %v627
    %1028 = vmatprep.subr.bf16.mxu0 0
    %1029 = vmatpush1.bf16.msra.mxu0 %v628
    %1030 = vmatprep.subr.bf16.mxu0 0
    %1031 = vmatpush1.bf16.msra.mxu0 %v629
    %1032 = vmatprep.subr.bf16.mxu0 0
    %1033 = vmatpush1.bf16.msra.mxu0 %v630
    %1034 = vmatprep.subr.bf16.mxu0 0
    %1035 = vmatpush1.bf16.msra.mxu0 %v631
    %1036 = vmatprep.subr.bf16.mxu0 0
    %1037 = vmatpush1.bf16.msra.mxu0 %v632
    %1038 = vmatprep.subr.bf16.mxu0 0
    %1039 = vmatpush1.bf16.msra.mxu0 %v633
    %1040 = vmatprep.subr.bf16.mxu0 0
    %1041 = vmatpush1.bf16.msra.mxu0 0
    %1042 = vmatprep.subr.bf16.mxu0 0
    %1043 = vmatpush1.bf16.msra.mxu0 0
    %1044 = vmatprep.subr.bf16.mxu0 0
    %1045 = vmatpush1.bf16.msra.mxu0 0
    %1046 = vmatprep.subr.bf16.mxu0 0
    %1047 = vmatpush1.bf16.msra.mxu0 0
    %1048 = vmatprep.subr.bf16.mxu0 0
    %1049 = vmatpush1.bf16.msra.mxu0 0
    %1050 = vmatprep.subr.bf16.mxu0 0
    %1051 = vmatpush1.bf16.msra.mxu0 0
    %1052 = vmatprep.subr.bf16.mxu0 0
    %1053 = vmatpush1.bf16.msra.mxu0 0
    %1054 = vmatprep.subr.bf16.mxu0 0
    %1055 = vmatpush1.bf16.msra.mxu0 0
    %1056 = vmatprep.mubr.bf16.mxu0 0
    %1057 = vmatmul.mubr.bf16.gmra.mrb[0].mxu0 %v1023
    %v1058 = vpop.f32.mrb[0].mxu0
    %v1059 = vadd.f32 %v592, %v1058
    %v1060 = vpop.f32.mrb[0].mxu0
    %v1061 = vpop.f32.mrb[0].mxu0
    %v1062 = vpop.f32.mrb[0].mxu0
    %1063 = vdwg.mxu0
    %v1064 = vmax.f32 %v1059, 0.0
    %v1065 = vmul.f32 %v1064, %v687
    %1066 = vadd.xlane.f32.xlu0 %v1065
    %v1067 = vpop.xlane.xlu0 %1066
    %v1068 = vld [vmem:[%s0 + $0x14] sm:$0xf]
    %v1069 = vunpack.c.l.bf16 %v1068
    %v1070 = vmul.f32 %v342, %v1069
    %v1071 = vadd.f32 %v1070, %v297
    %v1072 = vmul.f32 %v343, %v1071
    %v1073 = vadd.f32 %v1072, %v338
    %v1074 = vpack.c.bf16 %v1073, %v1073
    %1075 = vmatprep.subr.bf16.mxu0 0
    %1076 = vmatpush1.bf16.msra.mxu0 %v529
    %1077 = vmatprep.subr.bf16.mxu0 0
    %1078 = vmatpush1.bf16.msra.mxu0 %v530
    %1079 = vmatprep.subr.bf16.mxu0 0
    %1080 = vmatpush1.bf16.msra.mxu0 %v531
    %1081 = vmatprep.subr.bf16.mxu0 0
    %1082 = vmatpush1.bf16.msra.mxu0 %v532
    %1083 = vmatprep.subr.bf16.mxu0 0
    %1084 = vmatpush1.bf16.msra.mxu0 %v533
    %1085 = vmatprep.subr.bf16.mxu0 0
    %1086 = vmatpush1.bf16.msra.mxu0 %v534
    %1087 = vmatprep.subr.bf16.mxu0 0
    %1088 = vmatpush1.bf16.msra.mxu0 %v535
    %1089 = vmatprep.subr.bf16.mxu0 0
    %1090 = vmatpush1.bf16.msra.mxu0 %v536
    %1091 = vmatprep.subr.bf16.mxu0 0
    %1092 = vmatpush1.bf16.msra.mxu0 0
    %1093 = vmatprep.subr.bf16.mxu0 0
    %1094 = vmatpush1.bf16.msra.mxu0 0
    %1095 = vmatprep.subr.bf16.mxu0 0
    %1096 = vmatpush1.bf16.msra.mxu0 0
    %1097 = vmatprep.subr.bf16.mxu0 0
    %1098 = vmatpush1.bf16.msra.mxu0 0
    %1099 = vmatprep.subr.bf16.mxu0 0
    %1100 = vmatpush1.bf16.msra.mxu0 0
    %1101 = vmatprep.subr.bf16.mxu0 0
    %1102 = vmatpush1.bf16.msra.mxu0 0
    %1103 = vmatprep.subr.bf16.mxu0 0
    %1104 = vmatpush1.bf16.msra.mxu0 0
    %1105 = vmatprep.subr.bf16.mxu0 0
    %1106 = vmatpush1.bf16.msra.mxu0 0
    %1107 = vmatprep.mubr.bf16.mxu0 0
    %1108 = vmatmul.mubr.bf16.gmra.mrb[0].mxu0 %v1074
    %v1109 = vpop.f32.mrb[0].mxu0
    %v1110 = vadd.f32 0.0, %v1109
    %v1111 = vpop.f32.mrb[0].mxu0
    %v1112 = vpop.f32.mrb[0].mxu0
    %v1113 = vpop.f32.mrb[0].mxu0
    %1114 = vdwg.mxu0
    %v1115 = vadd.f32 %v451, %v1110
    %v1116 = vmax.f32 %v1115, 0.0
    %v1117 = vpack.c.bf16 %v1116, %v1116
    %1118 = vmatprep.subr.bf16.mxu0 0
    %1119 = vmatpush1.bf16.msra.mxu0 %v626
    %1120 = vmatprep.subr.bf16.mxu0 0
    %1121 = vmatpush1.bf16.msra.mxu0 %v627
    %1122 = vmatprep.subr.bf16.mxu0 0
    %1123 = vmatpush1.bf16.msra.mxu0 %v628
    %1124 = vmatprep.subr.bf16.mxu0 0
    %1125 = vmatpush1.bf16.msra.mxu0 %v629
    %1126 = vmatprep.subr.bf16.mxu0 0
    %1127 = vmatpush1.bf16.msra.mxu0 %v630
    %1128 = vmatprep.subr.bf16.mxu0 0
    %1129 = vmatpush1.bf16.msra.mxu0 %v631
    %1130 = vmatprep.subr.bf16.mxu0 0
    %1131 = vmatpush1.bf16.msra.mxu0 %v632
    %1132 = vmatprep.subr.bf16.mxu0 0
    %1133 = vmatpush1.bf16.msra.mxu0 %v633
    %1134 = vmatprep.subr.bf16.mxu0 0
    %1135 = vmatpush1.bf16.msra.mxu0 0
    %1136 = vmatprep.subr.bf16.mxu0 0
    %1137 = vmatpush1.bf16.msra.mxu0 0
    %1138 = vmatprep.subr.bf16.mxu0 0
    %1139 = vmatpush1.bf16.msra.mxu0 0
    %1140 = vmatprep.subr.bf16.mxu0 0
    %1141 = vmatpush1.bf16.msra.mxu0 0
    %1142 = vmatprep.subr.bf16.mxu0 0
    %1143 = vmatpush1.bf16.msra.mxu0 0
    %1144 = vmatprep.subr.bf16.mxu0 0
    %1145 = vmatpush1.bf16.msra.mxu0 0
    %1146 = vmatprep.subr.bf16.mxu0 0
    %1147 = vmatpush1.bf16.msra.mxu0 0
    %1148 = vmatprep.subr.bf16.mxu0 0
    %1149 = vmatpush1.bf16.msra.mxu0 0
    %1150 = vmatprep.mubr.bf16.mxu0 0
    %1151 = vmatmul.mubr.bf16.gmra.mrb[0].mxu0 %v1117
    %v1152 = vpop.f32.mrb[0].mxu0
    %v1153 = vadd.f32 %v592, %v1152
    %v1154 = vpop.f32.mrb[0].mxu0
    %v1155 = vpop.f32.mrb[0].mxu0
    %v1156 = vpop.f32.mrb[0].mxu0
    %1157 = vdwg.mxu0
    %v1158 = vmax.f32 %v1153, 0.0
    %v1159 = vmul.f32 %v1158, %v687
    %1160 = vadd.xlane.f32.xlu0 %v1159
    %v1161 = vpop.xlane.xlu0 %1160
    %v1162 = vld [vmem:[%s0 + $0x18] sm:$0xf]
    %v1163 = vunpack.c.l.bf16 %v1162
    %v1164 = vmul.f32 %v342, %v1163
    %v1165 = vadd.f32 %v1164, %v297
    %v1166 = vmul.f32 %v343, %v1165
    %v1167 = vadd.f32 %v1166, %v338
    %v1168 = vpack.c.bf16 %v1167, %v1167
    %1169 = vmatprep.subr.bf16.mxu0 0
    %1170 = vmatpush1.bf16.msra.mxu0 %v529
    %1171 = vmatprep.subr.bf16.mxu0 0
    %1172 = vmatpush1.bf16.msra.mxu0 %v530
    %1173 = vmatprep.subr.bf16.mxu0 0
    %1174 = vmatpush1.bf16.msra.mxu0 %v531
    %1175 = vmatprep.subr.bf16.mxu0 0
    %1176 = vmatpush1.bf16.msra.mxu0 %v532
    %1177 = vmatprep.subr.bf16.mxu0 0
    %1178 = vmatpush1.bf16.msra.mxu0 %v533
    %1179 = vmatprep.subr.bf16.mxu0 0
    %1180 = vmatpush1.bf16.msra.mxu0 %v534
    %1181 = vmatprep.subr.bf16.mxu0 0
    %1182 = vmatpush1.bf16.msra.mxu0 %v535
    %1183 = vmatprep.subr.bf16.mxu0 0
    %1184 = vmatpush1.bf16.msra.mxu0 %v536
    %1185 = vmatprep.subr.bf16.mxu0 0
    %1186 = vmatpush1.bf16.msra.mxu0 0
    %1187 = vmatprep.subr.bf16.mxu0 0
    %1188 = vmatpush1.bf16.msra.mxu0 0
    %1189 = vmatprep.subr.bf16.mxu0 0
    %1190 = vmatpush1.bf16.msra.mxu0 0
    %1191 = vmatprep.subr.bf16.mxu0 0
    %1192 = vmatpush1.bf16.msra.mxu0 0
    %1193 = vmatprep.subr.bf16.mxu0 0
    %1194 = vmatpush1.bf16.msra.mxu0 0
    %1195 = vmatprep.subr.bf16.mxu0 0
    %1196 = vmatpush1.bf16.msra.mxu0 0
    %1197 = vmatprep.subr.bf16.mxu0 0
    %1198 = vmatpush1.bf16.msra.mxu0 0
    %1199 = vmatprep.subr.bf16.mxu0 0
    %1200 = vmatpush1.bf16.msra.mxu0 0
    %1201 = vmatprep.mubr.bf16.mxu0 0
    %1202 = vmatmul.mubr.bf16.gmra.mrb[0].mxu0 %v1168
    %v1203 = vpop.f32.mrb[0].mxu0
    %v1204 = vadd.f32 0.0, %v1203
    %v1205 = vpop.f32.mrb[0].mxu0
    %v1206 = vpop.f32.mrb[0].mxu0
    %v1207 = vpop.f32.mrb[0].mxu0
    %1208 = vdwg.mxu0
    %v1209 = vadd.f32 %v451, %v1204
    %v1210 = vmax.f32 %v1209, 0.0
    %v1211 = vpack.c.bf16 %v1210, %v1210
    %1212 = vmatprep.subr.bf16.mxu0 0
    %1213 = vmatpush1.bf16.msra.mxu0 %v626
    %1214 = vmatprep.subr.bf16.mxu0 0
    %1215 = vmatpush1.bf16.msra.mxu0 %v627
    %1216 = vmatprep.subr.bf16.mxu0 0
    %1217 = vmatpush1.bf16.msra.mxu0 %v628
    %1218 = vmatprep.subr.bf16.mxu0 0
    %1219 = vmatpush1.bf16.msra.mxu0 %v629
    %1220 = vmatprep.subr.bf16.mxu0 0
    %1221 = vmatpush1.bf16.msra.mxu0 %v630
    %1222 = vmatprep.subr.bf16.mxu0 0
    %1223 = vmatpush1.bf16.msra.mxu0 %v631
    %1224 = vmatprep.subr.bf16.mxu0 0
    %1225 = vmatpush1.bf16.msra.mxu0 %v632
    %1226 = vmatprep.subr.bf16.mxu0 0
    %1227 = vmatpush1.bf16.msra.mxu0 %v633
    %1228 = vmatprep.subr.bf16.mxu0 0
    %1229 = vmatpush1.bf16.msra.mxu0 0
    %1230 = vmatprep.subr.bf16.mxu0 0
    %1231 = vmatpush1.bf16.msra.mxu0 0
    %1232 = vmatprep.subr.bf16.mxu0 0
    %1233 = vmatpush1.bf16.msra.mxu0 0
    %1234 = vmatprep.subr.bf16.mxu0 0
    %1235 = vmatpush1.bf16.msra.mxu0 0
    %1236 = vmatprep.subr.bf16.mxu0 0
    %1237 = vmatpush1.bf16.msra.mxu0 0
    %1238 = vmatprep.subr.bf16.mxu0 0
    %1239 = vmatpush1.bf16.msra.mxu0 0
    %1240 = vmatprep.subr.bf16.mxu0 0
    %1241 = vmatpush1.bf16.msra.mxu0 0
    %1242 = vmatprep.subr.bf16.mxu0 0
    %1243 = vmatpush1.bf16.msra.mxu0 0
    %1244 = vmatprep.mubr.bf16.mxu0 0
    %1245 = vmatmul.mubr.bf16.gmra.mrb[0].mxu0 %v1211
    %v1246 = vpop.f32.mrb[0].mxu0
    %v1247 = vadd.f32 %v592, %v1246
    %v1248 = vpop.f32.mrb[0].mxu0
    %v1249 = vpop.f32.mrb[0].mxu0
    %v1250 = vpop.f32.mrb[0].mxu0
    %1251 = vdwg.mxu0
    %v1252 = vmax.f32 %v1247, 0.0
    %v1253 = vmul.f32 %v1252, %v687
    %1254 = vadd.xlane.f32.xlu0 %v1253
    %v1255 = vpop.xlane.xlu0 %1254
    %vm1256 = vcmask 7168
    %v1257 = vsel %vm1256, %v691, %v785
    %vm1258 = vcmask 15360
    %v1259 = vsel %vm1258, %v1257, %v879
    %vm1260 = vcmask 23552
    %v1261 = vsel %vm1260, %v1259, %v973
    %vm1262 = vcmask 31744
    %v1263 = vsel %vm1262, %v1261, %v1067
    %vm1264 = vcmask 39936
    %v1265 = vsel %vm1264, %v1263, %v1161
    %vm1266 = vcmask 48128
    %v1267 = vsel %vm1266, %v1265, %v1255
    %v1268 = vld [vmem:[#allocation2] sm:$0x1]
    %v1270 = vlaneseq
    %v1271 = vshrl.u32 %v1270, 7
    %v1272 = vsub.s32 0, %v1271
    %v1273 = vrot.slane %v1268, %v1272
    %1274 = vset.pattern.permute.xlu0 0
    %1275 = vperm.xlu0 %1274, %v1273
    %v1276 = vpop.permute.xlu0 %1275
    %v1278 = vadd.f32 %v1267, %v1276
    %vm1279 = vcmask 56320
    %1280 = vst.msk [vmem:[#allocation3] sm:$0xff] %vm1279, %v1278
    // Predicated region
    $region50: #{decision_maker_forward.1} parent=1 // pred_check
      _
    $region51: #{decision_maker_forward.1} parent=1 // pred_check_branch
      %1282 = sbr.rel (0) target = $region53
    $region52: #{decision_maker_forward.1} parent=1 // pred_region
      %s1284 = ssub.s32 128, 128
      %1285 = vsyncadd [#allocation4], %s1284
      %s1287 = sshll.u32 [#allocation3], 4
      %s1288 = int_to_ptr.vmem [resolvable:$true] %s1287
      %1290 = dma.vmem_to_hbm [thread:$0]  %s1288, 128, %s12, [#allocation4]
    $region53: #{decision_maker_forward.1} parent=1 // pred_fallthru
      _
    // Predicated region
    $region54: #{decision_maker_forward.1} parent=1 // pred_check
      _
    $region55: #{decision_maker_forward.1} parent=1 // pred_check_branch
      %1292 = sbr.rel (0) target = $region57
    $region56: #{decision_maker_forward.1} parent=1 // pred_region
      %1293 = dma.done [#allocation4], 128
    $region57: #{decision_maker_forward.1} parent=1 // pred_fallthru
      _
    %1294 = vsyncpa [#allocation4], 1

</llo_original>
